<compile_context>
chip_gen: v7x
topology: tpu7x:2x2x1
jax: 0.10.0
libtpu: 0.0.40
codegen_flags: <defaults>
</compile_context>

<pallas_src>
import functools
import math

import jax
import jax.numpy as jnp
import numpy as np
from jax.experimental import pallas as pl
from jax.experimental.pallas import tpu as pltpu

_HALF_LOG_2PI = 0.5 * math.log(2.0 * math.pi)
_BN_EPS = 1e-5


def _round_up(x, m):
    return ((x + m - 1) // m) * m


# ----------------------------------------------------------------------------
# Kernel
# ----------------------------------------------------------------------------
def _vae_flow_kernel(
    # batch-tiled data
    y_ref, m_ref, eps_ref, rmask_ref,
    # encoder params (resident)
    w1_ref, b1_ref, g1_ref, be1_ref,
    w2_ref, b2_ref, g2_ref, be2_ref,
    w3_ref, b3_ref,
    # fused / folded flow params (resident, stacked over flows)
    fw1x_ref, fw1h_ref, fb1_ref, fw2_ref, fb2_ref, fw3_ref, fb3_ref,
    # cumulative permutation for z_last
    afin_ref,
    # packed output slab
    out_ref,
):
    f32 = jnp.float32
    dot = functools.partial(jnp.dot, preferred_element_type=f32)

    z = eps_ref.shape[1]
    nflows = fw1x_ref.shape[0]
    two_nh = fw1x_ref.shape[2]
    tb = y_ref.shape[0]

    y = y_ref[...]
    rmask = rmask_ref[...]                          # (tb, 1) row-validity mask
    cnt = jnp.maximum(jnp.sum(rmask, axis=0, keepdims=True), 1.0)

    def bn(v, gamma, beta):
        # nn.BatchNorm1d training mode: per-feature batch stats, biased var.
        # rmask excludes padded rows so stats are exact for the real batch.
        mean = jnp.sum(v * rmask, axis=0, keepdims=True) / cnt
        d = (v - mean) * rmask
        var = jnp.sum(d * d, axis=0, keepdims=True) / cnt
        return (v - mean) * jax.lax.rsqrt(var + _BN_EPS) * gamma + beta

    def elu(v):
        # guarded so the discarded branch never overflows
        return jnp.where(v > 0, v, jnp.exp(jnp.minimum(v, 0.0)) - 1.0)

    # ---- encoder: Linear -> BN -> ELU -> Linear -> BN -> ELU -> Linear ----
    h = dot(y, w1_ref[...]) + b1_ref[...]
    h = elu(bn(h, g1_ref[...], be1_ref[...]))
    h = dot(h, w2_ref[...]) + b2_ref[...]
    h = elu(bn(h, g2_ref[...], be2_ref[...]))
    p = dot(h, w3_ref[...]) + b3_ref[...]           # (tb, 2z + z//2), one dot

    # ---- missing-data gate: clamp(sum(m, -1), 0, 1) ----
    sum_mask = jnp.clip(jnp.sum(m_ref[...], axis=-1, keepdims=True), 0.0, 1.0)
    mu0 = sum_mask * p[:, :z]
    logvar0 = sum_mask * p[:, z:2 * z]
    h0 = sum_mask * p[:, 2 * z:]

    # ---- prior rsample ----
    std = jnp.exp(0.5 * logvar0)
    sample0 = mu0 + eps_ref[...] * std

    # ---- flows: h-conditioning hoisted to one matmul for all flows ----
    hproj = dot(h0, fw1h_ref[...])                  # (tb, nflows * 2nh)

    yv = sample0                                    # "in-place" flow state
    log_det = jnp.zeros((tb, 1), f32)
    for i in range(nflows):
        hp = hproj[:, i * two_nh:(i + 1) * two_nh]
        a = elu(dot(yv, fw1x_ref[i]) + hp + fb1_ref[i])
        a = elu(dot(a, fw2_ref[i]) + fb2_ref[i])
        st = dot(a, fw3_ref[i]) + fb3_ref[i]        # (tb, 2z): [s_full|t_full]
        s_full = st[:, :z]                          # zeros on untouched lanes
        t_full = st[:, z:]
        yv = jnp.exp(s_full) * yv + t_full          # per-lane VPU update
        log_det = log_det + jnp.sum(s_full, axis=-1, keepdims=True)

    # recover torch lane order of zs[-1] with one small permutation matmul
    z_last = dot(yv, afin_ref[...])

    # ---- packed lane-dense output slab (one dense writeback per tile) ----
    out_ref[...] = jnp.zeros((tb, out_ref.shape[1]), f32)
    out_ref[:, 0:z] = sample0
    out_ref[:, z:2 * z] = z_last
    out_ref[:, 2 * z:3 * z] = mu0
    out_ref[:, 3 * z:4 * z] = logvar0
    out_ref[:, 4 * z:4 * z + 1] = log_det


# ----------------------------------------------------------------------------
# Parameter construction & host-side weight packing
# ----------------------------------------------------------------------------
def _linear(key, fan_in, fan_out):
    kw, kb = jax.random.split(key)
    bound = fan_in ** -0.5
    w = jax.random.uniform(kw, (fan_in, fan_out), jnp.float32, -bound, bound)
    b = jax.random.uniform(kb, (1, fan_out), jnp.float32, -bound, bound)
    return w, b


def init_params(key, N, z_size, nflows, flow_hidden):
    med_size = 10
    f_in = 2 * N + 26 + med_size + 1
    zh = z_size // 2
    keys = jax.random.split(key, 9)
    p = {}
    p["w1"], p["b1"] = _linear(keys[0], f_in, 95)
    p["g1"] = 1.0 + 0.05 * jax.random.normal(keys[1], (1, 95), jnp.float32)
    p["be1"] = 0.05 * jax.random.normal(keys[2], (1, 95), jnp.float32)
    p["w2"], p["b2"] = _linear(keys[3], 95, 70)
    p["g2"] = 1.0 + 0.05 * jax.random.normal(keys[4], (1, 70), jnp.float32)
    p["be2"] = 0.05 * jax.random.normal(keys[5], (1, 70), jnp.float32)
    p["w3"], p["b3"] = _linear(keys[6], 70, 2 * z_size + zh)

    def flow_mlp_stack(subkey):
        ks = jax.random.split(subkey, nflows)
        w1x, w1h, b1, w2, b2, w3l, b3l = [], [], [], [], [], [], []
        for k in ks:
            k1, k2, k3 = jax.random.split(k, 3)
            w_1, b_1 = _linear(k1, z_size, flow_hidden)   # in = cat(x0, h)
            w_2, b_2 = _linear(k2, flow_hidden, flow_hidden)
            w_3, b_3 = _linear(k3, flow_hidden, zh)
            w1x.append(w_1[:zh]); w1h.append(w_1[zh:]); b1.append(b_1)
            w2.append(w_2); b2.append(b_2); w3l.append(w_3); b3l.append(b_3)
        return tuple(jnp.stack(a) for a in (w1x, w1h, b1, w2, b2, w3l, b3l))

    (p["s_w1x"], p["s_w1h"], p["s_b1"], p["s_w2"], p["s_b2"],
     p["s_w3"], p["s_b3"]) = flow_mlp_stack(keys[7])
    (p["t_w1x"], p["t_w1h"], p["t_b1"], p["t_w2"], p["t_b2"],
     p["t_w3"], p["t_b3"]) = flow_mlp_stack(keys[8])
    # TODO(synk): decoder_net (Linear->BN->ELU->Linear) is not exercised by
    # VAEImputeFlows.forward(); it is intentionally not implemented here.
    return p


def _pack_flow_weights(params, z_size, nflows):
    """Fold even/odd select + cat-placement matrices into the flow MLP
    weights and fuse the s/t branches, so the kernel does 3 dots per flow."""
    f32 = jnp.float32
    z = z_size
    zh = z // 2
    row = jnp.arange(z)[:, None]
    col = jnp.arange(zh)[None, :]
    sel_even = (row == 2 * col).astype(f32)                 # (z, zh)
    sel_odd = (row == 2 * col + 1).astype(f32)              # (z, zh)
    eye = jnp.eye(zh, dtype=f32)
    zero = jnp.zeros((zh, zh), f32)
    e_first = jnp.concatenate([eye, zero], axis=1)          # (zh, z)
    e_second = jnp.concatenate([zero, eye], axis=1)         # (zh, z)

    def bdiag(a, b):
        top = jnp.concatenate([a, jnp.zeros((a.shape[0], b.shape[1]), f32)], 1)
        bot = jnp.concatenate([jnp.zeros((b.shape[0], a.shape[1]), f32), b], 1)
        return jnp.concatenate([top, bot], axis=0)

    A = jnp.eye(z, dtype=f32)       # cumulative permutation (in-place -> torch)
    fw1x, fb1, fw2, fb2, fw3, fb3, w1h_cols = [], [], [], [], [], [], []
    for i in range(nflows):
        parity = i % 2
        S0, S1 = (sel_odd, sel_even) if parity else (sel_even, sel_odd)
        E0, E1 = (e_second, e_first) if parity else (e_first, e_second)
        AS0 = A @ S0                # (z, zh) picks x0 lanes from in-place state
        M = A @ S1                  # (z, zh) picks x1 (transformed) lanes

        s_w1x = AS0 @ params["s_w1x"][i]
        t_w1x = AS0 @ params["t_w1x"][i]
        s_w3 = params["s_w3"][i] @ M.T          # scatter s to full z width
        t_w3 = params["t_w3"][i] @ M.T
        s_b3 = params["s_b3"][i] @ M.T
        t_b3 = params["t_b3"][i] @ M.T

        fw1x.append(jnp.concatenate([s_w1x, t_w1x], axis=1))      # (z, 2nh)
        w1h_cols.append(jnp.concatenate(
            [params["s_w1h"][i], params["t_w1h"][i]], axis=1))    # (zh, 2nh)
        fb1.append(jnp.concatenate(
            [params["s_b1"][i], params["t_b1"][i]], axis=1))      # (1, 2nh)
        fw2.append(bdiag(params["s_w2"][i], params["t_w2"][i]))   # (2nh, 2nh)
        fb2.append(jnp.concatenate(
            [params["s_b2"][i], params["t_b2"][i]], axis=1))      # (1, 2nh)
        fw3.append(bdiag(s_w3, t_w3))                             # (2nh, 2z)
        fb3.append(jnp.concatenate([s_b3, t_b3], axis=1))         # (1, 2z)

        A = A @ (S0 @ E0 + S1 @ E1)             # fold this flow's permutation

    return dict(
        fw1x=jnp.stack(fw1x),
        fw1h=jnp.concatenate(w1h_cols, axis=1),   # (zh, nflows*2nh) hoisted
        fb1=jnp.stack(fb1),
        fw2=jnp.stack(fw2),
        fb2=jnp.stack(fb2),
        fw3=jnp.stack(fw3),
        fb3=jnp.stack(fb3),
        afin=A,                                   # (z, z)
    )


# ----------------------------------------------------------------------------
# Host wrapper
# ----------------------------------------------------------------------------
def vae_impute_flows_forward(params, t, x, m, env, med, eps, *, z_size, nflows,
                             tile_b=None):
    B = x.shape[0]
    z = z_size
    y = jnp.concatenate([x, m, t, env, med], axis=-1).astype(jnp.float32)

    packed = _pack_flow_weights(params, z_size, nflows)

    # batch tiling: pad to a multiple of 8 (sublane) / tile_b, rows masked
    if tile_b is None:
        tile_b = min(_round_up(max(B, 1), 8), 1024)
    tile_b = max(8, (tile_b // 8) * 8)
    b_pad = _round_up(B, tile_b)
    # TODO(synk): with more than one batch tile BatchNorm statistics become
    # per-tile rather than full-batch (torch training-mode BN over all rows).

    def pad_rows(a):
        return jnp.pad(a, ((0, b_pad - B), (0, 0)))

    y_p = pad_rows(y)
    m_p = pad_rows(m.astype(jnp.float32))
    eps_p = pad_rows(eps.astype(jnp.float32))
    rmask = pad_rows(jnp.ones((B, 1), jnp.float32))

    slab_w = _round_up(4 * z + 1, 128)   # lane-dense packed output slab

    inputs = (
        y_p, m_p, eps_p, rmask,
        params["w1"], params["b1"], params["g1"], params["be1"],
        params["w2"], params["b2"], params["g2"], params["be2"],
        params["w3"], params["b3"],
        packed["fw1x"], packed["fw1h"], packed["fb1"],
        packed["fw2"], packed["fb2"], packed["fw3"], packed["fb3"],
        packed["afin"],
    )

    n_batched = 4
    in_specs = []
    for idx, a in enumerate(inputs):
        if idx < n_batched:
            in_specs.append(pl.BlockSpec((tile_b, a.shape[1]),
                                         lambda b: (b, 0)))
        else:  # weights: resident in VMEM across all grid steps
            nd = a.ndim
            in_specs.append(pl.BlockSpec(a.shape,
                                         lambda b, _nd=nd: (0,) * _nd))

    out_spec = pl.BlockSpec((tile_b, slab_w), lambda b: (b, 0))
    out_shape = jax.ShapeDtypeStruct((b_pad, slab_w), jnp.float32)

    slab = pl.pallas_call(
        _vae_flow_kernel,
        grid=(b_pad // tile_b,),
        in_specs=in_specs,
        out_specs=out_spec,
        out_shape=out_shape,
        compiler_params=pltpu.CompilerParams(
            dimension_semantics=("parallel",),       # megacore on v7x
            vmem_limit_bytes=48 * 1024 * 1024),
    )(*inputs)

    sample0 = slab[:B, 0:z]
    z_last = slab[:B, z:2 * z]
    mu0 = slab[:B, 2 * z:3 * z]
    logvar0 = slab[:B, 3 * z:4 * z]
    log_det = slab[:B, 4 * z]
    # Normal entropy is affine in logvar0 -> computed on the host for free.
    entropy = 0.5 + _HALF_LOG_2PI + 0.5 * logvar0
    return sample0, z_last, mu0, logvar0, entropy, log_det


# ----------------------------------------------------------------------------
# Pure-JAX reference (unfolded math, mirrors the torch module)
# ----------------------------------------------------------------------------
def _reference_forward(params, t, x, m, env, med, eps, *, z_size, nflows):
    f32 = jnp.float32
    z = z_size
    y = jnp.concatenate([x, m, t, env, med], axis=-1).astype(f32)

    def bn(h, g, b):
        mean = jnp.mean(h, axis=0, keepdims=True)
        var = jnp.mean((h - mean) ** 2, axis=0, keepdims=True)
        return (h - mean) / jnp.sqrt(var + _BN_EPS) * g + b

    def elu(v):
        return jnp.where(v > 0, v, jnp.exp(jnp.minimum(v, 0.0)) - 1.0)

    h = elu(bn(y @ params["w1"] + params["b1"], params["g1"], params["be1"]))
    h = elu(bn(h @ params["w2"] + params["b2"], params["g2"], params["be2"]))
    p = h @ params["w3"] + params["b3"]

    sum_mask = jnp.clip(jnp.sum(m, axis=-1, keepdims=True), 0.0, 1.0)
    mu0 = sum_mask * p[:, :z]
    logvar0 = sum_mask * p[:, z:2 * z]
    h0 = sum_mask * p[:, 2 * z:]
    sample0 = mu0 + eps * jnp.exp(0.5 * logvar0)

    def mlp(inp, pre, i):
        w1 = jnp.concatenate([params[pre + "_w1x"][i],
                              params[pre + "_w1h"][i]], axis=0)
        a = elu(inp @ w1 + params[pre + "_b1"][i])
        a = elu(a @ params[pre + "_w2"][i] + params[pre + "_b2"][i])
        return a @ params[pre + "_w3"][i] + params[pre + "_b3"][i]

    xs = sample0
    log_det = jnp.zeros((x.shape[0],), f32)
    for i in range(nflows):
        x0, x1 = xs[:, ::2], xs[:, 1::2]
        if i % 2 == 1:
            x0, x1 = x1, x0
        inp = jnp.concatenate([x0, h0], axis=-1)
        s = mlp(inp, "s", i)
        tt = mlp(inp, "t", i)
        z0, z1 = x0, jnp.exp(s) * x1 + tt
        if i % 2 == 1:
            z0, z1 = z1, z0
        xs = jnp.concatenate([z0, z1], axis=1)
        log_det = log_det + jnp.sum(s, axis=-1)

    entropy = 0.5 + _HALF_LOG_2PI + 0.5 * logvar0
    return sample0, xs, mu0, logvar0, entropy, log_det


# ----------------------------------------------------------------------------
if __name__ == "__main__":
    N, z_size, decoder_size, Nflows, flow_hidden = 10, 8, 20, 3, 24
    B = 8
    key = jax.random.PRNGKey(0)
    k_t, k_x, k_m, k_env, k_med, k_eps, k_param = jax.random.split(key, 7)
    t = jax.random.uniform(k_t, (B, 1), jnp.float32)
    x = jax.random.normal(k_x, (B, N), jnp.float32)
    m = (jax.random.uniform(k_m, (B, N)) > 0.3).astype(jnp.float32)
    env = jax.random.normal(k_env, (B, 26), jnp.float32)
    med = (jax.random.uniform(k_med, (B, 10)) > 0.5).astype(jnp.float32)
    eps = jax.random.normal(k_eps, (B, z_size), jnp.float32)

    params = init_params(k_param, N, z_size, Nflows, flow_hidden)
    outs = vae_impute_flows_forward(params, t, x, m, env, med, eps,
                                    z_size=z_size, nflows=Nflows)
    outs = jax.block_until_ready(outs)
    sample0, z_last, mu0, logvar0, entropy, log_det = outs
    assert sample0.shape == (B, z_size) and z_last.shape == (B, z_size)
    assert mu0.shape == (B, z_size) and logvar0.shape == (B, z_size)
    assert entropy.shape == (B, z_size) and log_det.shape == (B,)

    refs = _reference_forward(params, t, x, m, env, med, eps,
                              z_size=z_size, nflows=Nflows)
    for got, want in zip(outs, refs):
        np.testing.assert_allclose(np.asarray(got), np.asarray(want),
                                   rtol=2e-2, atol=2e-2)
    print("KERNEL_OK")
</pallas_src>

<mosaic_0001>
module attributes {stable_mosaic.version = 11 : i64} {
  func.func @_vae_flow_kernel(%arg0: i32, %arg1: memref<8x57xf32, #tpu.memory_space<vmem>>, %arg2: memref<8x10xf32, #tpu.memory_space<vmem>>, %arg3: memref<8x8xf32, #tpu.memory_space<vmem>>, %arg4: memref<8x1xf32, #tpu.memory_space<vmem>>, %arg5: memref<57x95xf32, #tpu.memory_space<vmem>>, %arg6: memref<1x95xf32, #tpu.memory_space<vmem>>, %arg7: memref<1x95xf32, #tpu.memory_space<vmem>>, %arg8: memref<1x95xf32, #tpu.memory_space<vmem>>, %arg9: memref<95x70xf32, #tpu.memory_space<vmem>>, %arg10: memref<1x70xf32, #tpu.memory_space<vmem>>, %arg11: memref<1x70xf32, #tpu.memory_space<vmem>>, %arg12: memref<1x70xf32, #tpu.memory_space<vmem>>, %arg13: memref<70x20xf32, #tpu.memory_space<vmem>>, %arg14: memref<1x20xf32, #tpu.memory_space<vmem>>, %arg15: memref<3x8x48xf32, #tpu.memory_space<vmem>>, %arg16: memref<4x144xf32, #tpu.memory_space<vmem>>, %arg17: memref<3x1x48xf32, #tpu.memory_space<vmem>>, %arg18: memref<3x48x48xf32, #tpu.memory_space<vmem>>, %arg19: memref<3x1x48xf32, #tpu.memory_space<vmem>>, %arg20: memref<3x48x16xf32, #tpu.memory_space<vmem>>, %arg21: memref<3x1x16xf32, #tpu.memory_space<vmem>>, %arg22: memref<8x8xf32, #tpu.memory_space<vmem>>, %arg23: memref<8x128xf32, #tpu.memory_space<vmem>>) attributes {dimension_semantics = [#tpu.dimension_semantics<parallel>], iteration_bounds = array<i64: 1>, scalar_prefetch = 0 : i64, scratch_operands = 0 : i64, tpu.core_type = #tpu.core_type<tc>, window_params = [{transform_indices = @transform_0, window_bounds = array<i64: 8, 57>}, {transform_indices = @transform_1, window_bounds = array<i64: 8, 10>}, {transform_indices = @transform_2, window_bounds = array<i64: 8, 8>}, {transform_indices = @transform_3, window_bounds = array<i64: 8, 1>}, {pipeline_mode = #tpu.pipeline_mode<synchronous>, transform_indices = @transform_4, window_bounds = array<i64: 57, 95>}, {pipeline_mode = #tpu.pipeline_mode<synchronous>, transform_indices = @transform_5, window_bounds = array<i64: 1, 95>}, {pipeline_mode = #tpu.pipeline_mode<synchronous>, transform_indices = @transform_6, window_bounds = array<i64: 1, 95>}, {pipeline_mode = #tpu.pipeline_mode<synchronous>, transform_indices = @transform_7, window_bounds = array<i64: 1, 95>}, {pipeline_mode = #tpu.pipeline_mode<synchronous>, transform_indices = @transform_8, window_bounds = array<i64: 95, 70>}, {pipeline_mode = #tpu.pipeline_mode<synchronous>, transform_indices = @transform_9, window_bounds = array<i64: 1, 70>}, {pipeline_mode = #tpu.pipeline_mode<synchronous>, transform_indices = @transform_10, window_bounds = array<i64: 1, 70>}, {pipeline_mode = #tpu.pipeline_mode<synchronous>, transform_indices = @transform_11, window_bounds = array<i64: 1, 70>}, {pipeline_mode = #tpu.pipeline_mode<synchronous>, transform_indices = @transform_12, window_bounds = array<i64: 70, 20>}, {pipeline_mode = #tpu.pipeline_mode<synchronous>, transform_indices = @transform_13, window_bounds = array<i64: 1, 20>}, {pipeline_mode = #tpu.pipeline_mode<synchronous>, transform_indices = @transform_14, window_bounds = array<i64: 3, 8, 48>}, {pipeline_mode = #tpu.pipeline_mode<synchronous>, transform_indices = @transform_15, window_bounds = array<i64: 4, 144>}, {pipeline_mode = #tpu.pipeline_mode<synchronous>, transform_indices = @transform_16, window_bounds = array<i64: 3, 1, 48>}, {pipeline_mode = #tpu.pipeline_mode<synchronous>, transform_indices = @transform_17, window_bounds = array<i64: 3, 48, 48>}, {pipeline_mode = #tpu.pipeline_mode<synchronous>, transform_indices = @transform_18, window_bounds = array<i64: 3, 1, 48>}, {pipeline_mode = #tpu.pipeline_mode<synchronous>, transform_indices = @transform_19, window_bounds = array<i64: 3, 48, 16>}, {pipeline_mode = #tpu.pipeline_mode<synchronous>, transform_indices = @transform_20, window_bounds = array<i64: 3, 1, 16>}, {pipeline_mode = #tpu.pipeline_mode<synchronous>, transform_indices = @transform_21, window_bounds = array<i64: 8, 8>}, {transform_indices = @transform_22, window_bounds = array<i64: 8, 128>}]} {
    %c0 = arith.constant 0 : index
    %c0_0 = arith.constant 0 : index
    %0 = vector.load %arg1[%c0, %c0_0] : memref<8x57xf32, #tpu.memory_space<vmem>>, vector<8x57xf32>
    %c0_1 = arith.constant 0 : index
    %c0_2 = arith.constant 0 : index
    %1 = vector.load %arg4[%c0_1, %c0_2] : memref<8x1xf32, #tpu.memory_space<vmem>>, vector<8x1xf32>
    %cst = arith.constant dense<0.000000e+00> : vector<1xf32>
    %2 = vector.multi_reduction <add>, %1, %cst [0] : vector<8x1xf32> to vector<1xf32>
    %3 = vector.shape_cast %2 : vector<1xf32> to vector<1x1xf32>
    %cst_3 = arith.constant 1.000000e+00 : f32
    %4 = vector.broadcast %cst_3 : f32 to vector<1x1xf32>
    %5 = arith.maximumf %3, %4 : vector<1x1xf32>
    %c0_4 = arith.constant 0 : index
    %c0_5 = arith.constant 0 : index
    %6 = vector.load %arg5[%c0_4, %c0_5] : memref<57x95xf32, #tpu.memory_space<vmem>>, vector<57x95xf32>
    %cst_6 = arith.constant dense<0.000000e+00> : vector<8x95xf32>
    %7 = tpu.matmul %0, %6, %cst_6 {dimension_numbers = #tpu.dot_dimension_numbers<[1], [0], [0], [1], [0, 0, 1, 1], [], []>} : vector<8x57xf32>, vector<57x95xf32>, vector<8x95xf32> -> vector<8x95xf32>
    %c0_7 = arith.constant 0 : index
    %c0_8 = arith.constant 0 : index
    %8 = vector.load %arg6[%c0_7, %c0_8] : memref<1x95xf32, #tpu.memory_space<vmem>>, vector<1x95xf32>
    %9 = vector.broadcast %8 : vector<1x95xf32> to vector<8x95xf32>
    %10 = arith.addf %7, %9 : vector<8x95xf32>
    %c0_9 = arith.constant 0 : index
    %c0_10 = arith.constant 0 : index
    %11 = vector.load %arg7[%c0_9, %c0_10] : memref<1x95xf32, #tpu.memory_space<vmem>>, vector<1x95xf32>
    %c0_11 = arith.constant 0 : index
    %c0_12 = arith.constant 0 : index
    %12 = vector.load %arg8[%c0_11, %c0_12] : memref<1x95xf32, #tpu.memory_space<vmem>>, vector<1x95xf32>
    %13 = vector.broadcast %1 : vector<8x1xf32> to vector<8x95xf32>
    %14 = arith.mulf %10, %13 : vector<8x95xf32>
    %cst_13 = arith.constant dense<0.000000e+00> : vector<95xf32>
    %15 = vector.multi_reduction <add>, %14, %cst_13 [0] : vector<8x95xf32> to vector<95xf32>
    %16 = vector.shape_cast %15 : vector<95xf32> to vector<1x95xf32>
    %17 = vector.broadcast %5 : vector<1x1xf32> to vector<1x95xf32>
    %18 = arith.divf %16, %17 : vector<1x95xf32>
    %19 = vector.broadcast %18 : vector<1x95xf32> to vector<8x95xf32>
    %20 = arith.subf %10, %19 : vector<8x95xf32>
    %21 = vector.broadcast %1 : vector<8x1xf32> to vector<8x95xf32>
    %22 = arith.mulf %20, %21 : vector<8x95xf32>
    %23 = arith.mulf %22, %22 : vector<8x95xf32>
    %cst_14 = arith.constant dense<0.000000e+00> : vector<95xf32>
    %24 = vector.multi_reduction <add>, %23, %cst_14 [0] : vector<8x95xf32> to vector<95xf32>
    %25 = vector.shape_cast %24 : vector<95xf32> to vector<1x95xf32>
    %26 = vector.broadcast %5 : vector<1x1xf32> to vector<1x95xf32>
    %27 = arith.divf %25, %26 : vector<1x95xf32>
    %28 = vector.broadcast %18 : vector<1x95xf32> to vector<8x95xf32>
    %29 = arith.subf %10, %28 : vector<8x95xf32>
    %cst_15 = arith.constant 9.99999974E-6 : f32
    %30 = vector.broadcast %cst_15 : f32 to vector<1x95xf32>
    %31 = arith.addf %27, %30 : vector<1x95xf32>
    %32 = math.rsqrt %31 : vector<1x95xf32>
    %33 = vector.broadcast %32 : vector<1x95xf32> to vector<8x95xf32>
    %34 = arith.mulf %29, %33 : vector<8x95xf32>
    %35 = vector.broadcast %11 : vector<1x95xf32> to vector<8x95xf32>
    %36 = arith.mulf %34, %35 : vector<8x95xf32>
    %37 = vector.broadcast %12 : vector<1x95xf32> to vector<8x95xf32>
    %38 = arith.addf %36, %37 : vector<8x95xf32>
    %cst_16 = arith.constant 0.000000e+00 : f32
    %39 = vector.broadcast %cst_16 : f32 to vector<8x95xf32>
    %40 = arith.cmpf ogt, %38, %39 : vector<8x95xf32>
    %cst_17 = arith.constant 0.000000e+00 : f32
    %41 = vector.broadcast %cst_17 : f32 to vector<8x95xf32>
    %42 = arith.minimumf %38, %41 : vector<8x95xf32>
    %43 = math.exp %42 : vector<8x95xf32>
    %cst_18 = arith.constant 1.000000e+00 : f32
    %44 = vector.broadcast %cst_18 : f32 to vector<8x95xf32>
    %45 = arith.subf %43, %44 : vector<8x95xf32>
    %46 = arith.select %40, %38, %45 : vector<8x95xi1>, vector<8x95xf32>
    %c0_19 = arith.constant 0 : index
    %c0_20 = arith.constant 0 : index
    %47 = vector.load %arg9[%c0_19, %c0_20] : memref<95x70xf32, #tpu.memory_space<vmem>>, vector<95x70xf32>
    %cst_21 = arith.constant dense<0.000000e+00> : vector<8x70xf32>
    %48 = tpu.matmul %46, %47, %cst_21 {dimension_numbers = #tpu.dot_dimension_numbers<[1], [0], [0], [1], [0, 0, 1, 1], [], []>} : vector<8x95xf32>, vector<95x70xf32>, vector<8x70xf32> -> vector<8x70xf32>
    %c0_22 = arith.constant 0 : index
    %c0_23 = arith.constant 0 : index
    %49 = vector.load %arg10[%c0_22, %c0_23] : memref<1x70xf32, #tpu.memory_space<vmem>>, vector<1x70xf32>
    %50 = vector.broadcast %49 : vector<1x70xf32> to vector<8x70xf32>
    %51 = arith.addf %48, %50 : vector<8x70xf32>
    %c0_24 = arith.constant 0 : index
    %c0_25 = arith.constant 0 : index
    %52 = vector.load %arg11[%c0_24, %c0_25] : memref<1x70xf32, #tpu.memory_space<vmem>>, vector<1x70xf32>
    %c0_26 = arith.constant 0 : index
    %c0_27 = arith.constant 0 : index
    %53 = vector.load %arg12[%c0_26, %c0_27] : memref<1x70xf32, #tpu.memory_space<vmem>>, vector<1x70xf32>
    %54 = vector.broadcast %1 : vector<8x1xf32> to vector<8x70xf32>
    %55 = arith.mulf %51, %54 : vector<8x70xf32>
    %cst_28 = arith.constant dense<0.000000e+00> : vector<70xf32>
    %56 = vector.multi_reduction <add>, %55, %cst_28 [0] : vector<8x70xf32> to vector<70xf32>
    %57 = vector.shape_cast %56 : vector<70xf32> to vector<1x70xf32>
    %58 = vector.broadcast %5 : vector<1x1xf32> to vector<1x70xf32>
    %59 = arith.divf %57, %58 : vector<1x70xf32>
    %60 = vector.broadcast %59 : vector<1x70xf32> to vector<8x70xf32>
    %61 = arith.subf %51, %60 : vector<8x70xf32>
    %62 = vector.broadcast %1 : vector<8x1xf32> to vector<8x70xf32>
    %63 = arith.mulf %61, %62 : vector<8x70xf32>
    %64 = arith.mulf %63, %63 : vector<8x70xf32>
    %cst_29 = arith.constant dense<0.000000e+00> : vector<70xf32>
    %65 = vector.multi_reduction <add>, %64, %cst_29 [0] : vector<8x70xf32> to vector<70xf32>
    %66 = vector.shape_cast %65 : vector<70xf32> to vector<1x70xf32>
    %67 = vector.broadcast %5 : vector<1x1xf32> to vector<1x70xf32>
    %68 = arith.divf %66, %67 : vector<1x70xf32>
    %69 = vector.broadcast %59 : vector<1x70xf32> to vector<8x70xf32>
    %70 = arith.subf %51, %69 : vector<8x70xf32>
    %cst_30 = arith.constant 9.99999974E-6 : f32
    %71 = vector.broadcast %cst_30 : f32 to vector<1x70xf32>
    %72 = arith.addf %68, %71 : vector<1x70xf32>
    %73 = math.rsqrt %72 : vector<1x70xf32>
    %74 = vector.broadcast %73 : vector<1x70xf32> to vector<8x70xf32>
    %75 = arith.mulf %70, %74 : vector<8x70xf32>
    %76 = vector.broadcast %52 : vector<1x70xf32> to vector<8x70xf32>
    %77 = arith.mulf %75, %76 : vector<8x70xf32>
    %78 = vector.broadcast %53 : vector<1x70xf32> to vector<8x70xf32>
    %79 = arith.addf %77, %78 : vector<8x70xf32>
    %cst_31 = arith.constant 0.000000e+00 : f32
    %80 = vector.broadcast %cst_31 : f32 to vector<8x70xf32>
    %81 = arith.cmpf ogt, %79, %80 : vector<8x70xf32>
    %cst_32 = arith.constant 0.000000e+00 : f32
    %82 = vector.broadcast %cst_32 : f32 to vector<8x70xf32>
    %83 = arith.minimumf %79, %82 : vector<8x70xf32>
    %84 = math.exp %83 : vector<8x70xf32>
    %cst_33 = arith.constant 1.000000e+00 : f32
    %85 = vector.broadcast %cst_33 : f32 to vector<8x70xf32>
    %86 = arith.subf %84, %85 : vector<8x70xf32>
    %87 = arith.select %81, %79, %86 : vector<8x70xi1>, vector<8x70xf32>
    %c0_34 = arith.constant 0 : index
    %c0_35 = arith.constant 0 : index
    %88 = vector.load %arg13[%c0_34, %c0_35] : memref<70x20xf32, #tpu.memory_space<vmem>>, vector<70x20xf32>
    %cst_36 = arith.constant dense<0.000000e+00> : vector<8x20xf32>
    %89 = tpu.matmul %87, %88, %cst_36 {dimension_numbers = #tpu.dot_dimension_numbers<[1], [0], [0], [1], [0, 0, 1, 1], [], []>} : vector<8x70xf32>, vector<70x20xf32>, vector<8x20xf32> -> vector<8x20xf32>
    %c0_37 = arith.constant 0 : index
    %c0_38 = arith.constant 0 : index
    %90 = vector.load %arg14[%c0_37, %c0_38] : memref<1x20xf32, #tpu.memory_space<vmem>>, vector<1x20xf32>
    %91 = vector.broadcast %90 : vector<1x20xf32> to vector<8x20xf32>
    %92 = arith.addf %89, %91 : vector<8x20xf32>
    %c0_39 = arith.constant 0 : index
    %c0_40 = arith.constant 0 : index
    %93 = vector.load %arg2[%c0_39, %c0_40] : memref<8x10xf32, #tpu.memory_space<vmem>>, vector<8x10xf32>
    %cst_41 = arith.constant dense<0.000000e+00> : vector<8xf32>
    %94 = vector.multi_reduction <add>, %93, %cst_41 [1] : vector<8x10xf32> to vector<8xf32>
    %95 = vector.shape_cast %94 : vector<8xf32> to vector<8x1xf32>
    %cst_42 = arith.constant 0.000000e+00 : f32
    %cst_43 = arith.constant 1.000000e+00 : f32
    %96 = vector.broadcast %cst_42 : f32 to vector<8x1xf32>
    %97 = arith.maximumf %96, %95 : vector<8x1xf32>
    %98 = vector.broadcast %cst_43 : f32 to vector<8x1xf32>
    %99 = arith.minimumf %98, %97 : vector<8x1xf32>
    %100 = vector.extract_strided_slice %92 {offsets = [0, 0], sizes = [8, 8], strides = [1, 1]} : vector<8x20xf32> to vector<8x8xf32>
    %101 = vector.broadcast %99 : vector<8x1xf32> to vector<8x8xf32>
    %102 = arith.mulf %101, %100 : vector<8x8xf32>
    %103 = vector.extract_strided_slice %92 {offsets = [0, 8], sizes = [8, 8], strides = [1, 1]} : vector<8x20xf32> to vector<8x8xf32>
    %104 = vector.broadcast %99 : vector<8x1xf32> to vector<8x8xf32>
    %105 = arith.mulf %104, %103 : vector<8x8xf32>
    %106 = vector.extract_strided_slice %92 {offsets = [0, 16], sizes = [8, 4], strides = [1, 1]} : vector<8x20xf32> to vector<8x4xf32>
    %107 = vector.broadcast %99 : vector<8x1xf32> to vector<8x4xf32>
    %108 = arith.mulf %107, %106 : vector<8x4xf32>
    %cst_44 = arith.constant 5.000000e-01 : f32
    %109 = vector.broadcast %cst_44 : f32 to vector<8x8xf32>
    %110 = arith.mulf %109, %105 : vector<8x8xf32>
    %111 = math.exp %110 : vector<8x8xf32>
    %c0_45 = arith.constant 0 : index
    %c0_46 = arith.constant 0 : index
    %112 = vector.load %arg3[%c0_45, %c0_46] : memref<8x8xf32, #tpu.memory_space<vmem>>, vector<8x8xf32>
    %113 = arith.mulf %112, %111 : vector<8x8xf32>
    %114 = arith.addf %102, %113 : vector<8x8xf32>
    %c0_47 = arith.constant 0 : index
    %c0_48 = arith.constant 0 : index
    %115 = vector.load %arg16[%c0_47, %c0_48] : memref<4x144xf32, #tpu.memory_space<vmem>>, vector<4x144xf32>
    %cst_49 = arith.constant dense<0.000000e+00> : vector<8x144xf32>
    %116 = tpu.matmul %108, %115, %cst_49 {dimension_numbers = #tpu.dot_dimension_numbers<[1], [0], [0], [1], [0, 0, 1, 1], [], []>} : vector<8x4xf32>, vector<4x144xf32>, vector<8x144xf32> -> vector<8x144xf32>
    %cst_50 = arith.constant 0.000000e+00 : f32
    %117 = vector.broadcast %cst_50 : f32 to vector<8x1xf32>
    %118 = vector.extract_strided_slice %116 {offsets = [0, 0], sizes = [8, 48], strides = [1, 1]} : vector<8x144xf32> to vector<8x48xf32>
    %c0_51 = arith.constant 0 : index
    %c0_52 = arith.constant 0 : index
    %c0_53 = arith.constant 0 : index
    %119 = vector.load %arg15[%c0_51, %c0_52, %c0_53] : memref<3x8x48xf32, #tpu.memory_space<vmem>>, vector<1x8x48xf32>
    %120 = vector.shape_cast %119 : vector<1x8x48xf32> to vector<8x48xf32>
    %cst_54 = arith.constant dense<0.000000e+00> : vector<8x48xf32>
    %121 = tpu.matmul %114, %120, %cst_54 {dimension_numbers = #tpu.dot_dimension_numbers<[1], [0], [0], [1], [0, 0, 1, 1], [], []>} : vector<8x8xf32>, vector<8x48xf32>, vector<8x48xf32> -> vector<8x48xf32>
    %122 = arith.addf %121, %118 : vector<8x48xf32>
    %c0_55 = arith.constant 0 : index
    %c0_56 = arith.constant 0 : index
    %c0_57 = arith.constant 0 : index
    %123 = vector.load %arg17[%c0_55, %c0_56, %c0_57] : memref<3x1x48xf32, #tpu.memory_space<vmem>>, vector<1x1x48xf32>
    %124 = vector.shape_cast %123 : vector<1x1x48xf32> to vector<1x48xf32>
    %125 = vector.broadcast %124 : vector<1x48xf32> to vector<8x48xf32>
    %126 = arith.addf %122, %125 : vector<8x48xf32>
    %cst_58 = arith.constant 0.000000e+00 : f32
    %127 = vector.broadcast %cst_58 : f32 to vector<8x48xf32>
    %128 = arith.cmpf ogt, %126, %127 : vector<8x48xf32>
    %cst_59 = arith.constant 0.000000e+00 : f32
    %129 = vector.broadcast %cst_59 : f32 to vector<8x48xf32>
    %130 = arith.minimumf %126, %129 : vector<8x48xf32>
    %131 = math.exp %130 : vector<8x48xf32>
    %cst_60 = arith.constant 1.000000e+00 : f32
    %132 = vector.broadcast %cst_60 : f32 to vector<8x48xf32>
    %133 = arith.subf %131, %132 : vector<8x48xf32>
    %134 = arith.select %128, %126, %133 : vector<8x48xi1>, vector<8x48xf32>
    %c0_61 = arith.constant 0 : index
    %c0_62 = arith.constant 0 : index
    %c0_63 = arith.constant 0 : index
    %135 = vector.load %arg18[%c0_61, %c0_62, %c0_63] : memref<3x48x48xf32, #tpu.memory_space<vmem>>, vector<1x48x48xf32>
    %136 = vector.shape_cast %135 : vector<1x48x48xf32> to vector<48x48xf32>
    %cst_64 = arith.constant dense<0.000000e+00> : vector<8x48xf32>
    %137 = tpu.matmul %134, %136, %cst_64 {dimension_numbers = #tpu.dot_dimension_numbers<[1], [0], [0], [1], [0, 0, 1, 1], [], []>} : vector<8x48xf32>, vector<48x48xf32>, vector<8x48xf32> -> vector<8x48xf32>
    %c0_65 = arith.constant 0 : index
    %c0_66 = arith.constant 0 : index
    %c0_67 = arith.constant 0 : index
    %138 = vector.load %arg19[%c0_65, %c0_66, %c0_67] : memref<3x1x48xf32, #tpu.memory_space<vmem>>, vector<1x1x48xf32>
    %139 = vector.shape_cast %138 : vector<1x1x48xf32> to vector<1x48xf32>
    %140 = vector.broadcast %139 : vector<1x48xf32> to vector<8x48xf32>
    %141 = arith.addf %137, %140 : vector<8x48xf32>
    %cst_68 = arith.constant 0.000000e+00 : f32
    %142 = vector.broadcast %cst_68 : f32 to vector<8x48xf32>
    %143 = arith.cmpf ogt, %141, %142 : vector<8x48xf32>
    %cst_69 = arith.constant 0.000000e+00 : f32
    %144 = vector.broadcast %cst_69 : f32 to vector<8x48xf32>
    %145 = arith.minimumf %141, %144 : vector<8x48xf32>
    %146 = math.exp %145 : vector<8x48xf32>
    %cst_70 = arith.constant 1.000000e+00 : f32
    %147 = vector.broadcast %cst_70 : f32 to vector<8x48xf32>
    %148 = arith.subf %146, %147 : vector<8x48xf32>
    %149 = arith.select %143, %141, %148 : vector<8x48xi1>, vector<8x48xf32>
    %c0_71 = arith.constant 0 : index
    %c0_72 = arith.constant 0 : index
    %c0_73 = arith.constant 0 : index
    %150 = vector.load %arg20[%c0_71, %c0_72, %c0_73] : memref<3x48x16xf32, #tpu.memory_space<vmem>>, vector<1x48x16xf32>
    %151 = vector.shape_cast %150 : vector<1x48x16xf32> to vector<48x16xf32>
    %cst_74 = arith.constant dense<0.000000e+00> : vector<8x16xf32>
    %152 = tpu.matmul %149, %151, %cst_74 {dimension_numbers = #tpu.dot_dimension_numbers<[1], [0], [0], [1], [0, 0, 1, 1], [], []>} : vector<8x48xf32>, vector<48x16xf32>, vector<8x16xf32> -> vector<8x16xf32>
    %c0_75 = arith.constant 0 : index
    %c0_76 = arith.constant 0 : index
    %c0_77 = arith.constant 0 : index
    %153 = vector.load %arg21[%c0_75, %c0_76, %c0_77] : memref<3x1x16xf32, #tpu.memory_space<vmem>>, vector<1x1x16xf32>
    %154 = vector.shape_cast %153 : vector<1x1x16xf32> to vector<1x16xf32>
    %155 = vector.broadcast %154 : vector<1x16xf32> to vector<8x16xf32>
    %156 = arith.addf %152, %155 : vector<8x16xf32>
    %157 = vector.extract_strided_slice %156 {offsets = [0, 0], sizes = [8, 8], strides = [1, 1]} : vector<8x16xf32> to vector<8x8xf32>
    %158 = vector.extract_strided_slice %156 {offsets = [0, 8], sizes = [8, 8], strides = [1, 1]} : vector<8x16xf32> to vector<8x8xf32>
    %159 = math.exp %157 : vector<8x8xf32>
    %160 = arith.mulf %159, %114 : vector<8x8xf32>
    %161 = arith.addf %160, %158 : vector<8x8xf32>
    %cst_78 = arith.constant dense<0.000000e+00> : vector<8xf32>
    %162 = vector.multi_reduction <add>, %157, %cst_78 [1] : vector<8x8xf32> to vector<8xf32>
    %163 = vector.shape_cast %162 : vector<8xf32> to vector<8x1xf32>
    %164 = arith.addf %117, %163 : vector<8x1xf32>
    %165 = vector.extract_strided_slice %116 {offsets = [0, 48], sizes = [8, 48], strides = [1, 1]} : vector<8x144xf32> to vector<8x48xf32>
    %c1 = arith.constant 1 : index
    %c0_79 = arith.constant 0 : index
    %c0_80 = arith.constant 0 : index
    %166 = vector.load %arg15[%c1, %c0_79, %c0_80] : memref<3x8x48xf32, #tpu.memory_space<vmem>>, vector<1x8x48xf32>
    %167 = vector.shape_cast %166 : vector<1x8x48xf32> to vector<8x48xf32>
    %cst_81 = arith.constant dense<0.000000e+00> : vector<8x48xf32>
    %168 = tpu.matmul %161, %167, %cst_81 {dimension_numbers = #tpu.dot_dimension_numbers<[1], [0], [0], [1], [0, 0, 1, 1], [], []>} : vector<8x8xf32>, vector<8x48xf32>, vector<8x48xf32> -> vector<8x48xf32>
    %169 = arith.addf %168, %165 : vector<8x48xf32>
    %c1_82 = arith.constant 1 : index
    %c0_83 = arith.constant 0 : index
    %c0_84 = arith.constant 0 : index
    %170 = vector.load %arg17[%c1_82, %c0_83, %c0_84] : memref<3x1x48xf32, #tpu.memory_space<vmem>>, vector<1x1x48xf32>
    %171 = vector.shape_cast %170 : vector<1x1x48xf32> to vector<1x48xf32>
    %172 = vector.broadcast %171 : vector<1x48xf32> to vector<8x48xf32>
    %173 = arith.addf %169, %172 : vector<8x48xf32>
    %cst_85 = arith.constant 0.000000e+00 : f32
    %174 = vector.broadcast %cst_85 : f32 to vector<8x48xf32>
    %175 = arith.cmpf ogt, %173, %174 : vector<8x48xf32>
    %cst_86 = arith.constant 0.000000e+00 : f32
    %176 = vector.broadcast %cst_86 : f32 to vector<8x48xf32>
    %177 = arith.minimumf %173, %176 : vector<8x48xf32>
    %178 = math.exp %177 : vector<8x48xf32>
    %cst_87 = arith.constant 1.000000e+00 : f32
    %179 = vector.broadcast %cst_87 : f32 to vector<8x48xf32>
    %180 = arith.subf %178, %179 : vector<8x48xf32>
    %181 = arith.select %175, %173, %180 : vector<8x48xi1>, vector<8x48xf32>
    %c1_88 = arith.constant 1 : index
    %c0_89 = arith.constant 0 : index
    %c0_90 = arith.constant 0 : index
    %182 = vector.load %arg18[%c1_88, %c0_89, %c0_90] : memref<3x48x48xf32, #tpu.memory_space<vmem>>, vector<1x48x48xf32>
    %183 = vector.shape_cast %182 : vector<1x48x48xf32> to vector<48x48xf32>
    %cst_91 = arith.constant dense<0.000000e+00> : vector<8x48xf32>
    %184 = tpu.matmul %181, %183, %cst_91 {dimension_numbers = #tpu.dot_dimension_numbers<[1], [0], [0], [1], [0, 0, 1, 1], [], []>} : vector<8x48xf32>, vector<48x48xf32>, vector<8x48xf32> -> vector<8x48xf32>
    %c1_92 = arith.constant 1 : index
    %c0_93 = arith.constant 0 : index
    %c0_94 = arith.constant 0 : index
    %185 = vector.load %arg19[%c1_92, %c0_93, %c0_94] : memref<3x1x48xf32, #tpu.memory_space<vmem>>, vector<1x1x48xf32>
    %186 = vector.shape_cast %185 : vector<1x1x48xf32> to vector<1x48xf32>
    %187 = vector.broadcast %186 : vector<1x48xf32> to vector<8x48xf32>
    %188 = arith.addf %184, %187 : vector<8x48xf32>
    %cst_95 = arith.constant 0.000000e+00 : f32
    %189 = vector.broadcast %cst_95 : f32 to vector<8x48xf32>
    %190 = arith.cmpf ogt, %188, %189 : vector<8x48xf32>
    %cst_96 = arith.constant 0.000000e+00 : f32
    %191 = vector.broadcast %cst_96 : f32 to vector<8x48xf32>
    %192 = arith.minimumf %188, %191 : vector<8x48xf32>
    %193 = math.exp %192 : vector<8x48xf32>
    %cst_97 = arith.constant 1.000000e+00 : f32
    %194 = vector.broadcast %cst_97 : f32 to vector<8x48xf32>
    %195 = arith.subf %193, %194 : vector<8x48xf32>
    %196 = arith.select %190, %188, %195 : vector<8x48xi1>, vector<8x48xf32>
    %c1_98 = arith.constant 1 : index
    %c0_99 = arith.constant 0 : index
    %c0_100 = arith.constant 0 : index
    %197 = vector.load %arg20[%c1_98, %c0_99, %c0_100] : memref<3x48x16xf32, #tpu.memory_space<vmem>>, vector<1x48x16xf32>
    %198 = vector.shape_cast %197 : vector<1x48x16xf32> to vector<48x16xf32>
    %cst_101 = arith.constant dense<0.000000e+00> : vector<8x16xf32>
    %199 = tpu.matmul %196, %198, %cst_101 {dimension_numbers = #tpu.dot_dimension_numbers<[1], [0], [0], [1], [0, 0, 1, 1], [], []>} : vector<8x48xf32>, vector<48x16xf32>, vector<8x16xf32> -> vector<8x16xf32>
    %c1_102 = arith.constant 1 : index
    %c0_103 = arith.constant 0 : index
    %c0_104 = arith.constant 0 : index
    %200 = vector.load %arg21[%c1_102, %c0_103, %c0_104] : memref<3x1x16xf32, #tpu.memory_space<vmem>>, vector<1x1x16xf32>
    %201 = vector.shape_cast %200 : vector<1x1x16xf32> to vector<1x16xf32>
    %202 = vector.broadcast %201 : vector<1x16xf32> to vector<8x16xf32>
    %203 = arith.addf %199, %202 : vector<8x16xf32>
    %204 = vector.extract_strided_slice %203 {offsets = [0, 0], sizes = [8, 8], strides = [1, 1]} : vector<8x16xf32> to vector<8x8xf32>
    %205 = vector.extract_strided_slice %203 {offsets = [0, 8], sizes = [8, 8], strides = [1, 1]} : vector<8x16xf32> to vector<8x8xf32>
    %206 = math.exp %204 : vector<8x8xf32>
    %207 = arith.mulf %206, %161 : vector<8x8xf32>
    %208 = arith.addf %207, %205 : vector<8x8xf32>
    %cst_105 = arith.constant dense<0.000000e+00> : vector<8xf32>
    %209 = vector.multi_reduction <add>, %204, %cst_105 [1] : vector<8x8xf32> to vector<8xf32>
    %210 = vector.shape_cast %209 : vector<8xf32> to vector<8x1xf32>
    %211 = arith.addf %164, %210 : vector<8x1xf32>
    %212 = vector.extract_strided_slice %116 {offsets = [0, 96], sizes = [8, 48], strides = [1, 1]} : vector<8x144xf32> to vector<8x48xf32>
    %c2 = arith.constant 2 : index
    %c0_106 = arith.constant 0 : index
    %c0_107 = arith.constant 0 : index
    %213 = vector.load %arg15[%c2, %c0_106, %c0_107] : memref<3x8x48xf32, #tpu.memory_space<vmem>>, vector<1x8x48xf32>
    %214 = vector.shape_cast %213 : vector<1x8x48xf32> to vector<8x48xf32>
    %cst_108 = arith.constant dense<0.000000e+00> : vector<8x48xf32>
    %215 = tpu.matmul %208, %214, %cst_108 {dimension_numbers = #tpu.dot_dimension_numbers<[1], [0], [0], [1], [0, 0, 1, 1], [], []>} : vector<8x8xf32>, vector<8x48xf32>, vector<8x48xf32> -> vector<8x48xf32>
    %216 = arith.addf %215, %212 : vector<8x48xf32>
    %c2_109 = arith.constant 2 : index
    %c0_110 = arith.constant 0 : index
    %c0_111 = arith.constant 0 : index
    %217 = vector.load %arg17[%c2_109, %c0_110, %c0_111] : memref<3x1x48xf32, #tpu.memory_space<vmem>>, vector<1x1x48xf32>
    %218 = vector.shape_cast %217 : vector<1x1x48xf32> to vector<1x48xf32>
    %219 = vector.broadcast %218 : vector<1x48xf32> to vector<8x48xf32>
    %220 = arith.addf %216, %219 : vector<8x48xf32>
    %cst_112 = arith.constant 0.000000e+00 : f32
    %221 = vector.broadcast %cst_112 : f32 to vector<8x48xf32>
    %222 = arith.cmpf ogt, %220, %221 : vector<8x48xf32>
    %cst_113 = arith.constant 0.000000e+00 : f32
    %223 = vector.broadcast %cst_113 : f32 to vector<8x48xf32>
    %224 = arith.minimumf %220, %223 : vector<8x48xf32>
    %225 = math.exp %224 : vector<8x48xf32>
    %cst_114 = arith.constant 1.000000e+00 : f32
    %226 = vector.broadcast %cst_114 : f32 to vector<8x48xf32>
    %227 = arith.subf %225, %226 : vector<8x48xf32>
    %228 = arith.select %222, %220, %227 : vector<8x48xi1>, vector<8x48xf32>
    %c2_115 = arith.constant 2 : index
    %c0_116 = arith.constant 0 : index
    %c0_117 = arith.constant 0 : index
    %229 = vector.load %arg18[%c2_115, %c0_116, %c0_117] : memref<3x48x48xf32, #tpu.memory_space<vmem>>, vector<1x48x48xf32>
    %230 = vector.shape_cast %229 : vector<1x48x48xf32> to vector<48x48xf32>
    %cst_118 = arith.constant dense<0.000000e+00> : vector<8x48xf32>
    %231 = tpu.matmul %228, %230, %cst_118 {dimension_numbers = #tpu.dot_dimension_numbers<[1], [0], [0], [1], [0, 0, 1, 1], [], []>} : vector<8x48xf32>, vector<48x48xf32>, vector<8x48xf32> -> vector<8x48xf32>
    %c2_119 = arith.constant 2 : index
    %c0_120 = arith.constant 0 : index
    %c0_121 = arith.constant 0 : index
    %232 = vector.load %arg19[%c2_119, %c0_120, %c0_121] : memref<3x1x48xf32, #tpu.memory_space<vmem>>, vector<1x1x48xf32>
    %233 = vector.shape_cast %232 : vector<1x1x48xf32> to vector<1x48xf32>
    %234 = vector.broadcast %233 : vector<1x48xf32> to vector<8x48xf32>
    %235 = arith.addf %231, %234 : vector<8x48xf32>
    %cst_122 = arith.constant 0.000000e+00 : f32
    %236 = vector.broadcast %cst_122 : f32 to vector<8x48xf32>
    %237 = arith.cmpf ogt, %235, %236 : vector<8x48xf32>
    %cst_123 = arith.constant 0.000000e+00 : f32
    %238 = vector.broadcast %cst_123 : f32 to vector<8x48xf32>
    %239 = arith.minimumf %235, %238 : vector<8x48xf32>
    %240 = math.exp %239 : vector<8x48xf32>
    %cst_124 = arith.constant 1.000000e+00 : f32
    %241 = vector.broadcast %cst_124 : f32 to vector<8x48xf32>
    %242 = arith.subf %240, %241 : vector<8x48xf32>
    %243 = arith.select %237, %235, %242 : vector<8x48xi1>, vector<8x48xf32>
    %c2_125 = arith.constant 2 : index
    %c0_126 = arith.constant 0 : index
    %c0_127 = arith.constant 0 : index
    %244 = vector.load %arg20[%c2_125, %c0_126, %c0_127] : memref<3x48x16xf32, #tpu.memory_space<vmem>>, vector<1x48x16xf32>
    %245 = vector.shape_cast %244 : vector<1x48x16xf32> to vector<48x16xf32>
    %cst_128 = arith.constant dense<0.000000e+00> : vector<8x16xf32>
    %246 = tpu.matmul %243, %245, %cst_128 {dimension_numbers = #tpu.dot_dimension_numbers<[1], [0], [0], [1], [0, 0, 1, 1], [], []>} : vector<8x48xf32>, vector<48x16xf32>, vector<8x16xf32> -> vector<8x16xf32>
    %c2_129 = arith.constant 2 : index
    %c0_130 = arith.constant 0 : index
    %c0_131 = arith.constant 0 : index
    %247 = vector.load %arg21[%c2_129, %c0_130, %c0_131] : memref<3x1x16xf32, #tpu.memory_space<vmem>>, vector<1x1x16xf32>
    %248 = vector.shape_cast %247 : vector<1x1x16xf32> to vector<1x16xf32>
    %249 = vector.broadcast %248 : vector<1x16xf32> to vector<8x16xf32>
    %250 = arith.addf %246, %249 : vector<8x16xf32>
    %251 = vector.extract_strided_slice %250 {offsets = [0, 0], sizes = [8, 8], strides = [1, 1]} : vector<8x16xf32> to vector<8x8xf32>
    %252 = vector.extract_strided_slice %250 {offsets = [0, 8], sizes = [8, 8], strides = [1, 1]} : vector<8x16xf32> to vector<8x8xf32>
    %253 = math.exp %251 : vector<8x8xf32>
    %254 = arith.mulf %253, %208 : vector<8x8xf32>
    %255 = arith.addf %254, %252 : vector<8x8xf32>
    %cst_132 = arith.constant dense<0.000000e+00> : vector<8xf32>
    %256 = vector.multi_reduction <add>, %251, %cst_132 [1] : vector<8x8xf32> to vector<8xf32>
    %257 = vector.shape_cast %256 : vector<8xf32> to vector<8x1xf32>
    %258 = arith.addf %211, %257 : vector<8x1xf32>
    %c0_133 = arith.constant 0 : index
    %c0_134 = arith.constant 0 : index
    %259 = vector.load %arg22[%c0_133, %c0_134] : memref<8x8xf32, #tpu.memory_space<vmem>>, vector<8x8xf32>
    %cst_135 = arith.constant dense<0.000000e+00> : vector<8x8xf32>
    %260 = tpu.matmul %255, %259, %cst_135 {dimension_numbers = #tpu.dot_dimension_numbers<[1], [0], [0], [1], [0, 0, 1, 1], [], []>} : vector<8x8xf32>, vector<8x8xf32>, vector<8x8xf32> -> vector<8x8xf32>
    %cst_136 = arith.constant 0.000000e+00 : f32
    %261 = vector.broadcast %cst_136 : f32 to vector<8x128xf32>
    %c0_137 = arith.constant 0 : index
    %c0_138 = arith.constant 0 : index
    %262 = vector.load %arg23[%c0_137, %c0_138] : memref<8x128xf32, #tpu.memory_space<vmem>>, vector<8x128xf32>
    tpu.vector_store %arg23[%c0_137, %c0_138], %261 {strides = array<i32>} : memref<8x128xf32, #tpu.memory_space<vmem>>, vector<8x128xf32>,
    %c0_139 = arith.constant 0 : index
    %c0_140 = arith.constant 0 : index
    %263 = vector.load %arg23[%c0_139, %c0_140] : memref<8x128xf32, #tpu.memory_space<vmem>>, vector<8x8xf32>
    tpu.vector_store %arg23[%c0_139, %c0_140], %114 {strides = array<i32>} : memref<8x128xf32, #tpu.memory_space<vmem>>, vector<8x8xf32>,
    %c0_141 = arith.constant 0 : index
    %c8 = arith.constant 8 : index
    %264 = vector.load %arg23[%c0_141, %c8] : memref<8x128xf32, #tpu.memory_space<vmem>>, vector<8x8xf32>
    tpu.vector_store %arg23[%c0_141, %c8], %260 {strides = array<i32>} : memref<8x128xf32, #tpu.memory_space<vmem>>, vector<8x8xf32>,
    %c0_142 = arith.constant 0 : index
    %c16 = arith.constant 16 : index
    %265 = vector.load %arg23[%c0_142, %c16] : memref<8x128xf32, #tpu.memory_space<vmem>>, vector<8x8xf32>
    tpu.vector_store %arg23[%c0_142, %c16], %102 {strides = array<i32>} : memref<8x128xf32, #tpu.memory_space<vmem>>, vector<8x8xf32>,
    %c0_143 = arith.constant 0 : index
    %c24 = arith.constant 24 : index
    %266 = vector.load %arg23[%c0_143, %c24] : memref<8x128xf32, #tpu.memory_space<vmem>>, vector<8x8xf32>
    tpu.vector_store %arg23[%c0_143, %c24], %105 {strides = array<i32>} : memref<8x128xf32, #tpu.memory_space<vmem>>, vector<8x8xf32>,
    %c0_144 = arith.constant 0 : index
    %c32 = arith.constant 32 : index
    %267 = vector.load %arg23[%c0_144, %c32] : memref<8x128xf32, #tpu.memory_space<vmem>>, vector<8x1xf32>
    tpu.vector_store %arg23[%c0_144, %c32], %258 {strides = array<i32>} : memref<8x128xf32, #tpu.memory_space<vmem>>, vector<8x1xf32>,
    return
  }
  func.func @transform_0(%arg0: i32) -> (i32, i32) {
    %c0_i32 = arith.constant 0 : i32
    %c0_i32_0 = arith.constant 0 : i32
    return %arg0, %c0_i32 : i32, i32
  }
  func.func @transform_1(%arg0: i32) -> (i32, i32) {
    %c0_i32 = arith.constant 0 : i32
    %c0_i32_0 = arith.constant 0 : i32
    return %arg0, %c0_i32 : i32, i32
  }
  func.func @transform_2(%arg0: i32) -> (i32, i32) {
    %c0_i32 = arith.constant 0 : i32
    %c0_i32_0 = arith.constant 0 : i32
    return %arg0, %c0_i32 : i32, i32
  }
  func.func @transform_3(%arg0: i32) -> (i32, i32) {
    %c0_i32 = arith.constant 0 : i32
    %c0_i32_0 = arith.constant 0 : i32
    return %arg0, %c0_i32 : i32, i32
  }
  func.func @transform_4(%arg0: i32) -> (i32, i32) {
    %c0_i32 = arith.constant 0 : i32
    %c0_i32_0 = arith.constant 0 : i32
    %c0_i32_1 = arith.constant 0 : i32
    return %c0_i32, %c0_i32_0 : i32, i32
  }
  func.func @transform_5(%arg0: i32) -> (i32, i32) {
    %c0_i32 = arith.constant 0 : i32
    %c0_i32_0 = arith.constant 0 : i32
    %c0_i32_1 = arith.constant 0 : i32
    return %c0_i32, %c0_i32_0 : i32, i32
  }
  func.func @transform_6(%arg0: i32) -> (i32, i32) {
    %c0_i32 = arith.constant 0 : i32
    %c0_i32_0 = arith.constant 0 : i32
    %c0_i32_1 = arith.constant 0 : i32
    return %c0_i32, %c0_i32_0 : i32, i32
  }
  func.func @transform_7(%arg0: i32) -> (i32, i32) {
    %c0_i32 = arith.constant 0 : i32
    %c0_i32_0 = arith.constant 0 : i32
    %c0_i32_1 = arith.constant 0 : i32
    return %c0_i32, %c0_i32_0 : i32, i32
  }
  func.func @transform_8(%arg0: i32) -> (i32, i32) {
    %c0_i32 = arith.constant 0 : i32
    %c0_i32_0 = arith.constant 0 : i32
    %c0_i32_1 = arith.constant 0 : i32
    return %c0_i32, %c0_i32_0 : i32, i32
  }
  func.func @transform_9(%arg0: i32) -> (i32, i32) {
    %c0_i32 = arith.constant 0 : i32
    %c0_i32_0 = arith.constant 0 : i32
    %c0_i32_1 = arith.constant 0 : i32
    return %c0_i32, %c0_i32_0 : i32, i32
  }
  func.func @transform_10(%arg0: i32) -> (i32, i32) {
    %c0_i32 = arith.constant 0 : i32
    %c0_i32_0 = arith.constant 0 : i32
    %c0_i32_1 = arith.constant 0 : i32
    return %c0_i32, %c0_i32_0 : i32, i32
  }
  func.func @transform_11(%arg0: i32) -> (i32, i32) {
    %c0_i32 = arith.constant 0 : i32
    %c0_i32_0 = arith.constant 0 : i32
    %c0_i32_1 = arith.constant 0 : i32
    return %c0_i32, %c0_i32_0 : i32, i32
  }
  func.func @transform_12(%arg0: i32) -> (i32, i32) {
    %c0_i32 = arith.constant 0 : i32
    %c0_i32_0 = arith.constant 0 : i32
    %c0_i32_1 = arith.constant 0 : i32
    return %c0_i32, %c0_i32_0 : i32, i32
  }
  func.func @transform_13(%arg0: i32) -> (i32, i32) {
    %c0_i32 = arith.constant 0 : i32
    %c0_i32_0 = arith.constant 0 : i32
    %c0_i32_1 = arith.constant 0 : i32
    return %c0_i32, %c0_i32_0 : i32, i32
  }
  func.func @transform_14(%arg0: i32) -> (i32, i32, i32) {
    %c0_i32 = arith.constant 0 : i32
    %c0_i32_0 = arith.constant 0 : i32
    %c0_i32_1 = arith.constant 0 : i32
    %c0_i32_2 = arith.constant 0 : i32
    return %c0_i32, %c0_i32_0, %c0_i32_1 : i32, i32, i32
  }
  func.func @transform_15(%arg0: i32) -> (i32, i32) {
    %c0_i32 = arith.constant 0 : i32
    %c0_i32_0 = arith.constant 0 : i32
    %c0_i32_1 = arith.constant 0 : i32
    return %c0_i32, %c0_i32_0 : i32, i32
  }
  func.func @transform_16(%arg0: i32) -> (i32, i32, i32) {
    %c0_i32 = arith.constant 0 : i32
    %c0_i32_0 = arith.constant 0 : i32
    %c0_i32_1 = arith.constant 0 : i32
    %c0_i32_2 = arith.constant 0 : i32
    return %c0_i32, %c0_i32_0, %c0_i32_1 : i32, i32, i32
  }
  func.func @transform_17(%arg0: i32) -> (i32, i32, i32) {
    %c0_i32 = arith.constant 0 : i32
    %c0_i32_0 = arith.constant 0 : i32
    %c0_i32_1 = arith.constant 0 : i32
    %c0_i32_2 = arith.constant 0 : i32
    return %c0_i32, %c0_i32_0, %c0_i32_1 : i32, i32, i32
  }
  func.func @transform_18(%arg0: i32) -> (i32, i32, i32) {
    %c0_i32 = arith.constant 0 : i32
    %c0_i32_0 = arith.constant 0 : i32
    %c0_i32_1 = arith.constant 0 : i32
    %c0_i32_2 = arith.constant 0 : i32
    return %c0_i32, %c0_i32_0, %c0_i32_1 : i32, i32, i32
  }
  func.func @transform_19(%arg0: i32) -> (i32, i32, i32) {
    %c0_i32 = arith.constant 0 : i32
    %c0_i32_0 = arith.constant 0 : i32
    %c0_i32_1 = arith.constant 0 : i32
    %c0_i32_2 = arith.constant 0 : i32
    return %c0_i32, %c0_i32_0, %c0_i32_1 : i32, i32, i32
  }
  func.func @transform_20(%arg0: i32) -> (i32, i32, i32) {
    %c0_i32 = arith.constant 0 : i32
    %c0_i32_0 = arith.constant 0 : i32
    %c0_i32_1 = arith.constant 0 : i32
    %c0_i32_2 = arith.constant 0 : i32
    return %c0_i32, %c0_i32_0, %c0_i32_1 : i32, i32, i32
  }
  func.func @transform_21(%arg0: i32) -> (i32, i32) {
    %c0_i32 = arith.constant 0 : i32
    %c0_i32_0 = arith.constant 0 : i32
    %c0_i32_1 = arith.constant 0 : i32
    return %c0_i32, %c0_i32_0 : i32, i32
  }
  func.func @transform_22(%arg0: i32) -> (i32, i32) {
    %c0_i32 = arith.constant 0 : i32
    %c0_i32_0 = arith.constant 0 : i32
    return %arg0, %c0_i32 : i32, i32
  }
}

</mosaic_0001>

<llo_original>
// kernel: tpu_custom_call.1
$region0: #{tpu_custom_call.1}
  #allocation0 [shape = 'u32[]', space=smem, size = 0x4, offset = 0x4, fixed_abs, tag = 'smem constant byte address 0x4 - core index']
  #allocation1 [shape = 'u32[144,128]{1,0:T(1,128)}', space=vmem, size = 0x12000, scoped, tag = 'internal scratch']
  %s0 = inlined_call_operand.vmem [shape: f32[8,57], index: 0, kind: input, shape index: {}]
  %s1 = inlined_call_operand.vmem [shape: f32[8,10], index: 1, kind: input, shape index: {}]
  %s2 = inlined_call_operand.vmem [shape: f32[8,8], index: 2, kind: input, shape index: {}]
  %s3 = inlined_call_operand.vmem [shape: f32[8,1], index: 3, kind: input, shape index: {}]
  %s4 = inlined_call_operand.vmem [shape: f32[57,95], index: 4, kind: input, shape index: {}]
  %s5 = inlined_call_operand.vmem [shape: f32[1,95], index: 5, kind: input, shape index: {}]
  %s6 = inlined_call_operand.vmem [shape: f32[1,95], index: 6, kind: input, shape index: {}]
  %s7 = inlined_call_operand.vmem [shape: f32[1,95], index: 7, kind: input, shape index: {}]
  %s8 = inlined_call_operand.vmem [shape: f32[95,70], index: 8, kind: input, shape index: {}]
  %s9 = inlined_call_operand.vmem [shape: f32[1,70], index: 9, kind: input, shape index: {}]
  %s10 = inlined_call_operand.vmem [shape: f32[1,70], index: 10, kind: input, shape index: {}]
  %s11 = inlined_call_operand.vmem [shape: f32[1,70], index: 11, kind: input, shape index: {}]
  %s12 = inlined_call_operand.vmem [shape: f32[70,20], index: 12, kind: input, shape index: {}]
  %s13 = inlined_call_operand.vmem [shape: f32[1,20], index: 13, kind: input, shape index: {}]
  %s14 = inlined_call_operand.vmem [shape: f32[3,8,48], index: 14, kind: input, shape index: {}]
  %s15 = inlined_call_operand.vmem [shape: f32[4,144], index: 15, kind: input, shape index: {}]
  %s16 = inlined_call_operand.vmem [shape: f32[3,1,48], index: 16, kind: input, shape index: {}]
  %s17 = inlined_call_operand.vmem [shape: f32[3,48,48], index: 17, kind: input, shape index: {}]
  %s18 = inlined_call_operand.vmem [shape: f32[3,1,48], index: 18, kind: input, shape index: {}]
  %s19 = inlined_call_operand.vmem [shape: f32[3,48,16], index: 19, kind: input, shape index: {}]
  %s20 = inlined_call_operand.vmem [shape: f32[3,1,16], index: 20, kind: input, shape index: {}]
  %s21 = inlined_call_operand.vmem [shape: f32[8,8], index: 21, kind: input, shape index: {}]
  %s22 = inlined_call_operand.hbm [shape: f32[8,128], index: 22, kind: output, shape index: {}]
  %s23 = sld [smem:[#allocation0]]
  $region98: #{tpu_custom_call.1} parent=0
    _
  %s25 = ssub.s32 1, %s23
  %s26 = scalar_select 0, %s25, %s23
  $region1: #{tpu_custom_call.1} parent=0
    #allocation2 [shape = 'u8[4096]{0}', space=vmem, size = 0x1000, scoped, tag = 'output window, operand 0, single buffered']
    #allocation3 [shape = 's32[1]{0}', space=sflag, size = 0x4, scoped, tag = 'scoped memory for tpu_custom_call.1']
    %27 = vsyncpa [#allocation3], 0
    // Predicated region
    $region2: #{tpu_custom_call.1} parent=1 // pred_check
      _
    $region3: #{tpu_custom_call.1} parent=1 // pred_check_branch
      %29 = sbr.rel (0) target = $region5
    $region4: #{tpu_custom_call.1} parent=1 // pred_region
      _
    $region5: #{tpu_custom_call.1} parent=1 // pred_fallthru
      _
    // Predicated region
    $region6: #{tpu_custom_call.1} parent=1 // pred_check
      _
    $region7: #{tpu_custom_call.1} parent=1 // pred_check_branch
      %31 = sbr.rel (0) target = $region9
    $region8: #{tpu_custom_call.1} parent=1 // pred_region
      _
    $region9: #{tpu_custom_call.1} parent=1 // pred_fallthru
      _
    // Predicated region
    $region10: #{tpu_custom_call.1} parent=1 // pred_check
      _
    $region11: #{tpu_custom_call.1} parent=1 // pred_check_branch
      %33 = sbr.rel (0) target = $region13
    $region12: #{tpu_custom_call.1} parent=1 // pred_region
      _
    $region13: #{tpu_custom_call.1} parent=1 // pred_fallthru
      _
    // Predicated region
    $region14: #{tpu_custom_call.1} parent=1 // pred_check
      _
    $region15: #{tpu_custom_call.1} parent=1 // pred_check_branch
      %35 = sbr.rel (0) target = $region17
    $region16: #{tpu_custom_call.1} parent=1 // pred_region
      _
    $region17: #{tpu_custom_call.1} parent=1 // pred_fallthru
      _
    // Predicated region
    $region18: #{tpu_custom_call.1} parent=1 // pred_check
      _
    $region19: #{tpu_custom_call.1} parent=1 // pred_check_branch
      %37 = sbr.rel (0) target = $region21
    $region20: #{tpu_custom_call.1} parent=1 // pred_region
      _
    $region21: #{tpu_custom_call.1} parent=1 // pred_fallthru
      _
    // Predicated region
    $region22: #{tpu_custom_call.1} parent=1 // pred_check
      _
    $region23: #{tpu_custom_call.1} parent=1 // pred_check_branch
      %39 = sbr.rel (0) target = $region25
    $region24: #{tpu_custom_call.1} parent=1 // pred_region
      _
    $region25: #{tpu_custom_call.1} parent=1 // pred_fallthru
      _
    // Predicated region
    $region26: #{tpu_custom_call.1} parent=1 // pred_check
      _
    $region27: #{tpu_custom_call.1} parent=1 // pred_check_branch
      %41 = sbr.rel (0) target = $region29
    $region28: #{tpu_custom_call.1} parent=1 // pred_region
      _
    $region29: #{tpu_custom_call.1} parent=1 // pred_fallthru
      _
    // Predicated region
    $region30: #{tpu_custom_call.1} parent=1 // pred_check
      _
    $region31: #{tpu_custom_call.1} parent=1 // pred_check_branch
      %43 = sbr.rel (0) target = $region33
    $region32: #{tpu_custom_call.1} parent=1 // pred_region
      _
    $region33: #{tpu_custom_call.1} parent=1 // pred_fallthru
      _
    // Predicated region
    $region34: #{tpu_custom_call.1} parent=1 // pred_check
      _
    $region35: #{tpu_custom_call.1} parent=1 // pred_check_branch
      %45 = sbr.rel (0) target = $region37
    $region36: #{tpu_custom_call.1} parent=1 // pred_region
      _
    $region37: #{tpu_custom_call.1} parent=1 // pred_fallthru
      _
    // Predicated region
    $region38: #{tpu_custom_call.1} parent=1 // pred_check
      _
    $region39: #{tpu_custom_call.1} parent=1 // pred_check_branch
      %47 = sbr.rel (0) target = $region41
    $region40: #{tpu_custom_call.1} parent=1 // pred_region
      _
    $region41: #{tpu_custom_call.1} parent=1 // pred_fallthru
      _
    // Predicated region
    $region42: #{tpu_custom_call.1} parent=1 // pred_check
      _
    $region43: #{tpu_custom_call.1} parent=1 // pred_check_branch
      %49 = sbr.rel (0) target = $region45
    $region44: #{tpu_custom_call.1} parent=1 // pred_region
      _
    $region45: #{tpu_custom_call.1} parent=1 // pred_fallthru
      _
    // Predicated region
    $region46: #{tpu_custom_call.1} parent=1 // pred_check
      _
    $region47: #{tpu_custom_call.1} parent=1 // pred_check_branch
      %51 = sbr.rel (0) target = $region49
    $region48: #{tpu_custom_call.1} parent=1 // pred_region
      _
    $region49: #{tpu_custom_call.1} parent=1 // pred_fallthru
      _
    // Predicated region
    $region50: #{tpu_custom_call.1} parent=1 // pred_check
      _
    $region51: #{tpu_custom_call.1} parent=1 // pred_check_branch
      %53 = sbr.rel (0) target = $region53
    $region52: #{tpu_custom_call.1} parent=1 // pred_region
      _
    $region53: #{tpu_custom_call.1} parent=1 // pred_fallthru
      _
    // Predicated region
    $region54: #{tpu_custom_call.1} parent=1 // pred_check
      _
    $region55: #{tpu_custom_call.1} parent=1 // pred_check_branch
      %55 = sbr.rel (0) target = $region57
    $region56: #{tpu_custom_call.1} parent=1 // pred_region
      _
    $region57: #{tpu_custom_call.1} parent=1 // pred_fallthru
      _
    // Predicated region
    $region58: #{tpu_custom_call.1} parent=1 // pred_check
      _
    $region59: #{tpu_custom_call.1} parent=1 // pred_check_branch
      %57 = sbr.rel (0) target = $region61
    $region60: #{tpu_custom_call.1} parent=1 // pred_region
      _
    $region61: #{tpu_custom_call.1} parent=1 // pred_fallthru
      _
    // Predicated region
    $region62: #{tpu_custom_call.1} parent=1 // pred_check
      _
    $region63: #{tpu_custom_call.1} parent=1 // pred_check_branch
      %59 = sbr.rel (0) target = $region65
    $region64: #{tpu_custom_call.1} parent=1 // pred_region
      _
    $region65: #{tpu_custom_call.1} parent=1 // pred_fallthru
      _
    // Predicated region
    $region66: #{tpu_custom_call.1} parent=1 // pred_check
      _
    $region67: #{tpu_custom_call.1} parent=1 // pred_check_branch
      %61 = sbr.rel (0) target = $region69
    $region68: #{tpu_custom_call.1} parent=1 // pred_region
      _
    $region69: #{tpu_custom_call.1} parent=1 // pred_fallthru
      _
    // Predicated region
    $region70: #{tpu_custom_call.1} parent=1 // pred_check
      _
    $region71: #{tpu_custom_call.1} parent=1 // pred_check_branch
      %63 = sbr.rel (0) target = $region73
    $region72: #{tpu_custom_call.1} parent=1 // pred_region
      _
    $region73: #{tpu_custom_call.1} parent=1 // pred_fallthru
      _
    // Predicated region
    $region74: #{tpu_custom_call.1} parent=1 // pred_check
      _
    $region75: #{tpu_custom_call.1} parent=1 // pred_check_branch
      %65 = sbr.rel (0) target = $region77
    $region76: #{tpu_custom_call.1} parent=1 // pred_region
      _
    $region77: #{tpu_custom_call.1} parent=1 // pred_fallthru
      _
    // Predicated region
    $region78: #{tpu_custom_call.1} parent=1 // pred_check
      _
    $region79: #{tpu_custom_call.1} parent=1 // pred_check_branch
      %67 = sbr.rel (0) target = $region81
    $region80: #{tpu_custom_call.1} parent=1 // pred_region
      _
    $region81: #{tpu_custom_call.1} parent=1 // pred_fallthru
      _
    // Predicated region
    $region82: #{tpu_custom_call.1} parent=1 // pred_check
      _
    $region83: #{tpu_custom_call.1} parent=1 // pred_check_branch
      %69 = sbr.rel (0) target = $region85
    $region84: #{tpu_custom_call.1} parent=1 // pred_region
      _
    $region85: #{tpu_custom_call.1} parent=1 // pred_fallthru
      _
    // Predicated region
    $region86: #{tpu_custom_call.1} parent=1 // pred_check
      _
    $region87: #{tpu_custom_call.1} parent=1 // pred_check_branch
      %71 = sbr.rel (0) target = $region89
    $region88: #{tpu_custom_call.1} parent=1 // pred_region
      _
    $region89: #{tpu_custom_call.1} parent=1 // pred_fallthru
      _
    %v72 = vld [vmem:[%s0] sm:$0xff]
    %v73 = vld [vmem:[%s3] sm:$0xff]
    %vm74 = vcmask 7168
    %v75 = vsel %vm74, %v73, 0.0
    %v76 = vrot.slane %v75, 4
    %v77 = vadd.f32 %v75, %v76
    %v78 = vrot.slane %v77, 2
    %v79 = vadd.f32 %v77, %v78
    %v80 = vrot.slane %v79, 1
    %v81 = vadd.f32 %v79, %v80
    %v82 = vmax.f32 %v81, 1.0
    %v83 = vld [vmem:[%s4] sm:$0xff]
    %v84 = vld [vmem:[%s4 + $0x8] sm:$0xff]
    %v85 = vld [vmem:[%s4 + $0x10] sm:$0xff]
    %v86 = vld [vmem:[%s4 + $0x18] sm:$0xff]
    %v87 = vld [vmem:[%s4 + $0x20] sm:$0xff]
    %v88 = vld [vmem:[%s4 + $0x28] sm:$0xff]
    %v89 = vld [vmem:[%s4 + $0x30] sm:$0xff]
    %v90 = vld [vmem:[%s4 + $0x38] sm:$0x1]
    %v91 = vld [vmem:[%s5] sm:$0x1]
    %v93 = vlaneseq
    %v94 = vshrl.u32 %v93, 7
    %v95 = vsub.s32 0, %v94
    %v96 = vrot.slane %v91, %v95
    %vm98 = vcmask 465920
    %v100 = vsel %vm98, %v72, 0
    %vm102 = vcmask 1040384
    %v104 = vsel %vm102, %v90, 0
    %106 = vmatprep.subr.mxu0 0.0
    %107 = vmatpush1.msra.mxu0 %v83
    %108 = vmatprep.subr.mxu0 0.0
    %109 = vmatpush1.msra.mxu0 %v84
    %110 = vmatprep.subr.mxu0 0.0
    %111 = vmatpush1.msra.mxu0 %v85
    %112 = vmatprep.subr.mxu0 0.0
    %113 = vmatpush1.msra.mxu0 %v86
    %114 = vmatprep.subr.mxu0 0.0
    %115 = vmatpush1.msra.mxu0 %v87
    %116 = vmatprep.subr.mxu0 0.0
    %117 = vmatpush1.msra.mxu0 %v88
    %118 = vmatprep.subr.mxu0 0.0
    %119 = vmatpush1.msra.mxu0 %v89
    %120 = vmatprep.subr.mxu0 0.0
    %121 = vmatpush1.msra.mxu0 %v104
    %122 = vmatprep.subr.mxu0 0.0
    %123 = vmatpush1.msra.mxu0 0.0
    %124 = vmatprep.subr.mxu0 0.0
    %125 = vmatpush1.msra.mxu0 0.0
    %126 = vmatprep.subr.mxu0 0.0
    %127 = vmatpush1.msra.mxu0 0.0
    %128 = vmatprep.subr.mxu0 0.0
    %129 = vmatpush1.msra.mxu0 0.0
    %130 = vmatprep.subr.mxu0 0.0
    %131 = vmatpush1.msra.mxu0 0.0
    %132 = vmatprep.subr.mxu0 0.0
    %133 = vmatpush1.msra.mxu0 0.0
    %134 = vmatprep.subr.mxu0 0.0
    %135 = vmatpush1.msra.mxu0 0.0
    %136 = vmatprep.subr.mxu0 0.0
    %137 = vmatpush1.msra.mxu0 0.0
    %138 = vmatprep.subr.mxu0 0.0
    %139 = vmatpush1.msra.mxu0 0.0
    %140 = vmatprep.subr.mxu0 0.0
    %141 = vmatpush1.msra.mxu0 0.0
    %142 = vmatprep.subr.mxu0 0.0
    %143 = vmatpush1.msra.mxu0 0.0
    %144 = vmatprep.subr.mxu0 0.0
    %145 = vmatpush1.msra.mxu0 0.0
    %146 = vmatprep.subr.mxu0 0.0
    %147 = vmatpush1.msra.mxu0 0.0
    %148 = vmatprep.subr.mxu0 0.0
    %149 = vmatpush1.msra.mxu0 0.0
    %150 = vmatprep.subr.mxu0 0.0
    %151 = vmatpush1.msra.mxu0 0.0
    %152 = vmatprep.subr.mxu0 0.0
    %153 = vmatpush1.msra.mxu0 0.0
    %154 = vmatprep.subr.mxu0 0.0
    %155 = vmatpush1.msra.mxu0 0.0
    %156 = vmatprep.subr.mxu0 0.0
    %157 = vmatpush1.msra.mxu0 0.0
    %158 = vmatprep.subr.mxu0 0.0
    %159 = vmatpush1.msra.mxu0 0.0
    %160 = vmatprep.subr.mxu0 0.0
    %161 = vmatpush1.msra.mxu0 0.0
    %162 = vmatprep.subr.mxu0 0.0
    %163 = vmatpush1.msra.mxu0 0.0
    %164 = vmatprep.subr.mxu0 0.0
    %165 = vmatpush1.msra.mxu0 0.0
    %166 = vmatprep.subr.mxu0 0.0
    %167 = vmatpush1.msra.mxu0 0.0
    %168 = vmatprep.subr.mxu0 0.0
    %169 = vmatpush1.msra.mxu0 0.0
    %170 = vmatprep.mubr.f32.mxu0 0.0
    %171 = vmatmul.mubr.f32.gmra.mrb[0].mxu0 %v100
    %v172 = vpop.f32.mrb[0].mxu0
    %v173 = vadd.f32 %v96, %v172
    %v174 = vpop.f32.mrb[0].mxu0
    %175 = vdwg.mxu0
    %v176 = vld [vmem:[%s6] sm:$0x1]
    %v177 = vld [vmem:[%s7] sm:$0x1]
    %179 = vset.pattern.permute.xlu0 0
    %180 = vperm.xlu0 %179, %v73
    %v181 = vpop.permute.xlu0 %180
    %v183 = vmul.f32 %v173, %v181
    %vm184 = vcmask 777216
    %v185 = vsel %vm184, %v183, 0.0
    %v186 = vrot.slane %v185, 4
    %v187 = vadd.f32 %v185, %v186
    %v188 = vrot.slane %v187, 2
    %v189 = vadd.f32 %v187, %v188
    %v190 = vrot.slane %v189, 1
    %v191 = vadd.f32 %v189, %v190
    %193 = vset.pattern.permute.xlu0 0
    %194 = vperm.xlu0 %193, %v82
    %v195 = vpop.permute.xlu0 %194
    %v197 = vrcp.pop %v195
    %v198 = vmul.f32 %v191, %v197
    %v199 = vsub.f32 %v173, %v198
    %v200 = vmul.f32 %v199, %v181
    %v201 = vmul.f32 %v200, %v200
    %v202 = vsel %vm184, %v201, 0.0
    %v203 = vrot.slane %v202, 4
    %v204 = vadd.f32 %v202, %v203
    %v205 = vrot.slane %v204, 2
    %v206 = vadd.f32 %v204, %v205
    %v207 = vrot.slane %v206, 1
    %v208 = vadd.f32 %v206, %v207
    %v209 = vmul.f32 %v208, %v197
    %v210 = vadd.f32 %v209, 1e-05
    %v211 = vrsqrt.pop %v210
    %v212 = vmul.f32 %v199, %v211
    %v214 = vlaneseq
    %v215 = vshrl.u32 %v214, 7
    %v216 = vsub.s32 0, %v215
    %v217 = vrot.slane %v176, %v216
    %v219 = vmul.f32 %v212, %v217
    %v221 = vlaneseq
    %v222 = vshrl.u32 %v221, 7
    %v223 = vsub.s32 0, %v222
    %v224 = vrot.slane %v177, %v223
    %v226 = vadd.f32 %v219, %v224
    %vm227 = vcmp.gt.f32.partialorder %v226, 0.0
    %v228 = vmin.f32 %v226, 0.0
    %v229 = vmul.f32 %v228, 1.442695
    %v230 = vpow.pop %v229
    %v231 = vsub.f32 %v230, 1.0
    %v232 = vsel %vm227, %v226, %v231
    %v233 = vld [vmem:[%s8] sm:$0xff]
    %v234 = vld [vmem:[%s8 + $0x8] sm:$0xff]
    %v235 = vld [vmem:[%s8 + $0x10] sm:$0xff]
    %v236 = vld [vmem:[%s8 + $0x18] sm:$0xff]
    %v237 = vld [vmem:[%s8 + $0x20] sm:$0xff]
    %v238 = vld [vmem:[%s8 + $0x28] sm:$0xff]
    %v239 = vld [vmem:[%s8 + $0x30] sm:$0xff]
    %v240 = vld [vmem:[%s8 + $0x38] sm:$0xff]
    %v241 = vld [vmem:[%s8 + $0x40] sm:$0xff]
    %v242 = vld [vmem:[%s8 + $0x48] sm:$0xff]
    %v243 = vld [vmem:[%s8 + $0x50] sm:$0xff]
    %v244 = vld [vmem:[%s8 + $0x58] sm:$0x7f]
    %v245 = vld [vmem:[%s9] sm:$0x1]
    %v247 = vlaneseq
    %v248 = vshrl.u32 %v247, 7
    %v249 = vsub.s32 0, %v248
    %v250 = vrot.slane %v245, %v249
    %v253 = vsel %vm184, %v232, 0
    %vm255 = vcmask 1046528
    %v257 = vsel %vm255, %v244, 0
    %259 = vmatprep.subr.mxu0 0.0
    %260 = vmatpush1.msra.mxu0 %v233
    %261 = vmatprep.subr.mxu0 0.0
    %262 = vmatpush1.msra.mxu0 %v234
    %263 = vmatprep.subr.mxu0 0.0
    %264 = vmatpush1.msra.mxu0 %v235
    %265 = vmatprep.subr.mxu0 0.0
    %266 = vmatpush1.msra.mxu0 %v236
    %267 = vmatprep.subr.mxu0 0.0
    %268 = vmatpush1.msra.mxu0 %v237
    %269 = vmatprep.subr.mxu0 0.0
    %270 = vmatpush1.msra.mxu0 %v238
    %271 = vmatprep.subr.mxu0 0.0
    %272 = vmatpush1.msra.mxu0 %v239
    %273 = vmatprep.subr.mxu0 0.0
    %274 = vmatpush1.msra.mxu0 %v240
    %275 = vmatprep.subr.mxu0 0.0
    %276 = vmatpush1.msra.mxu0 %v241
    %277 = vmatprep.subr.mxu0 0.0
    %278 = vmatpush1.msra.mxu0 %v242
    %279 = vmatprep.subr.mxu0 0.0
    %280 = vmatpush1.msra.mxu0 %v243
    %281 = vmatprep.subr.mxu0 0.0
    %282 = vmatpush1.msra.mxu0 %v257
    %283 = vmatprep.subr.mxu0 0.0
    %284 = vmatpush1.msra.mxu0 0.0
    %285 = vmatprep.subr.mxu0 0.0
    %286 = vmatpush1.msra.mxu0 0.0
    %287 = vmatprep.subr.mxu0 0.0
    %288 = vmatpush1.msra.mxu0 0.0
    %289 = vmatprep.subr.mxu0 0.0
    %290 = vmatpush1.msra.mxu0 0.0
    %291 = vmatprep.subr.mxu0 0.0
    %292 = vmatpush1.msra.mxu0 0.0
    %293 = vmatprep.subr.mxu0 0.0
    %294 = vmatpush1.msra.mxu0 0.0
    %295 = vmatprep.subr.mxu0 0.0
    %296 = vmatpush1.msra.mxu0 0.0
    %297 = vmatprep.subr.mxu0 0.0
    %298 = vmatpush1.msra.mxu0 0.0
    %299 = vmatprep.subr.mxu0 0.0
    %300 = vmatpush1.msra.mxu0 0.0
    %301 = vmatprep.subr.mxu0 0.0
    %302 = vmatpush1.msra.mxu0 0.0
    %303 = vmatprep.subr.mxu0 0.0
    %304 = vmatpush1.msra.mxu0 0.0
    %305 = vmatprep.subr.mxu0 0.0
    %306 = vmatpush1.msra.mxu0 0.0
    %307 = vmatprep.subr.mxu0 0.0
    %308 = vmatpush1.msra.mxu0 0.0
    %309 = vmatprep.subr.mxu0 0.0
    %310 = vmatpush1.msra.mxu0 0.0
    %311 = vmatprep.subr.mxu0 0.0
    %312 = vmatpush1.msra.mxu0 0.0
    %313 = vmatprep.subr.mxu0 0.0
    %314 = vmatpush1.msra.mxu0 0.0
    %315 = vmatprep.subr.mxu0 0.0
    %316 = vmatpush1.msra.mxu0 0.0
    %317 = vmatprep.subr.mxu0 0.0
    %318 = vmatpush1.msra.mxu0 0.0
    %319 = vmatprep.subr.mxu0 0.0
    %320 = vmatpush1.msra.mxu0 0.0
    %321 = vmatprep.subr.mxu0 0.0
    %322 = vmatpush1.msra.mxu0 0.0
    %323 = vmatprep.mubr.f32.mxu0 0.0
    %324 = vmatmul.mubr.f32.gmra.mrb[0].mxu0 %v253
    %v325 = vpop.f32.mrb[0].mxu0
    %v326 = vadd.f32 %v250, %v325
    %v327 = vpop.f32.mrb[0].mxu0
    %328 = vdwg.mxu0
    %v329 = vld [vmem:[%s10] sm:$0x1]
    %v330 = vld [vmem:[%s11] sm:$0x1]
    %v331 = vmul.f32 %v326, %v181
    %vm332 = vcmask 572416
    %v333 = vsel %vm332, %v331, 0.0
    %v334 = vrot.slane %v333, 4
    %v335 = vadd.f32 %v333, %v334
    %v336 = vrot.slane %v335, 2
    %v337 = vadd.f32 %v335, %v336
    %v338 = vrot.slane %v337, 1
    %v339 = vadd.f32 %v337, %v338
    %v340 = vmul.f32 %v339, %v197
    %v341 = vsub.f32 %v326, %v340
    %v342 = vmul.f32 %v341, %v181
    %v343 = vmul.f32 %v342, %v342
    %v344 = vsel %vm332, %v343, 0.0
    %v345 = vrot.slane %v344, 4
    %v346 = vadd.f32 %v344, %v345
    %v347 = vrot.slane %v346, 2
    %v348 = vadd.f32 %v346, %v347
    %v349 = vrot.slane %v348, 1
    %v350 = vadd.f32 %v348, %v349
    %v351 = vmul.f32 %v350, %v197
    %v352 = vadd.f32 %v351, 1e-05
    %v353 = vrsqrt.pop %v352
    %v354 = vmul.f32 %v341, %v353
    %v356 = vlaneseq
    %v357 = vshrl.u32 %v356, 7
    %v358 = vsub.s32 0, %v357
    %v359 = vrot.slane %v329, %v358
    %v361 = vmul.f32 %v354, %v359
    %v363 = vlaneseq
    %v364 = vshrl.u32 %v363, 7
    %v365 = vsub.s32 0, %v364
    %v366 = vrot.slane %v330, %v365
    %v368 = vadd.f32 %v361, %v366
    %vm369 = vcmp.gt.f32.partialorder %v368, 0.0
    %v370 = vmin.f32 %v368, 0.0
    %v371 = vmul.f32 %v370, 1.442695
    %v372 = vpow.pop %v371
    %v373 = vsub.f32 %v372, 1.0
    %v374 = vsel %vm369, %v368, %v373
    %v375 = vld [vmem:[%s12] sm:$0xff]
    %v376 = vld [vmem:[%s12 + $0x8] sm:$0xff]
    %v377 = vld [vmem:[%s12 + $0x10] sm:$0xff]
    %v378 = vld [vmem:[%s12 + $0x18] sm:$0xff]
    %v379 = vld [vmem:[%s12 + $0x20] sm:$0xff]
    %v380 = vld [vmem:[%s12 + $0x28] sm:$0xff]
    %v381 = vld [vmem:[%s12 + $0x30] sm:$0xff]
    %v382 = vld [vmem:[%s12 + $0x38] sm:$0xff]
    %v383 = vld [vmem:[%s12 + $0x40] sm:$0x3f]
    %v384 = vld [vmem:[%s13] sm:$0x1]
    %v386 = vlaneseq
    %v387 = vshrl.u32 %v386, 7
    %v388 = vsub.s32 0, %v387
    %v389 = vrot.slane %v384, %v388
    %v392 = vsel %vm332, %v374, 0
    %vm394 = vcmask 1045504
    %v396 = vsel %vm394, %v383, 0
    %398 = vmatprep.subr.mxu0 0.0
    %399 = vmatpush1.msra.mxu0 %v375
    %400 = vmatprep.subr.mxu0 0.0
    %401 = vmatpush1.msra.mxu0 %v376
    %402 = vmatprep.subr.mxu0 0.0
    %403 = vmatpush1.msra.mxu0 %v377
    %404 = vmatprep.subr.mxu0 0.0
    %405 = vmatpush1.msra.mxu0 %v378
    %406 = vmatprep.subr.mxu0 0.0
    %407 = vmatpush1.msra.mxu0 %v379
    %408 = vmatprep.subr.mxu0 0.0
    %409 = vmatpush1.msra.mxu0 %v380
    %410 = vmatprep.subr.mxu0 0.0
    %411 = vmatpush1.msra.mxu0 %v381
    %412 = vmatprep.subr.mxu0 0.0
    %413 = vmatpush1.msra.mxu0 %v382
    %414 = vmatprep.subr.mxu0 0.0
    %415 = vmatpush1.msra.mxu0 %v396
    %416 = vmatprep.subr.mxu0 0.0
    %417 = vmatpush1.msra.mxu0 0.0
    %418 = vmatprep.subr.mxu0 0.0
    %419 = vmatpush1.msra.mxu0 0.0
    %420 = vmatprep.subr.mxu0 0.0
    %421 = vmatpush1.msra.mxu0 0.0
    %422 = vmatprep.subr.mxu0 0.0
    %423 = vmatpush1.msra.mxu0 0.0
    %424 = vmatprep.subr.mxu0 0.0
    %425 = vmatpush1.msra.mxu0 0.0
    %426 = vmatprep.subr.mxu0 0.0
    %427 = vmatpush1.msra.mxu0 0.0
    %428 = vmatprep.subr.mxu0 0.0
    %429 = vmatpush1.msra.mxu0 0.0
    %430 = vmatprep.subr.mxu0 0.0
    %431 = vmatpush1.msra.mxu0 0.0
    %432 = vmatprep.subr.mxu0 0.0
    %433 = vmatpush1.msra.mxu0 0.0
    %434 = vmatprep.subr.mxu0 0.0
    %435 = vmatpush1.msra.mxu0 0.0
    %436 = vmatprep.subr.mxu0 0.0
    %437 = vmatpush1.msra.mxu0 0.0
    %438 = vmatprep.subr.mxu0 0.0
    %439 = vmatpush1.msra.mxu0 0.0
    %440 = vmatprep.subr.mxu0 0.0
    %441 = vmatpush1.msra.mxu0 0.0
    %442 = vmatprep.subr.mxu0 0.0
    %443 = vmatpush1.msra.mxu0 0.0
    %444 = vmatprep.subr.mxu0 0.0
    %445 = vmatpush1.msra.mxu0 0.0
    %446 = vmatprep.subr.mxu0 0.0
    %447 = vmatpush1.msra.mxu0 0.0
    %448 = vmatprep.subr.mxu0 0.0
    %449 = vmatpush1.msra.mxu0 0.0
    %450 = vmatprep.subr.mxu0 0.0
    %451 = vmatpush1.msra.mxu0 0.0
    %452 = vmatprep.subr.mxu0 0.0
    %453 = vmatpush1.msra.mxu0 0.0
    %454 = vmatprep.subr.mxu0 0.0
    %455 = vmatpush1.msra.mxu0 0.0
    %456 = vmatprep.subr.mxu0 0.0
    %457 = vmatpush1.msra.mxu0 0.0
    %458 = vmatprep.subr.mxu0 0.0
    %459 = vmatpush1.msra.mxu0 0.0
    %460 = vmatprep.subr.mxu0 0.0
    %461 = vmatpush1.msra.mxu0 0.0
    %462 = vmatprep.mubr.f32.mxu0 0.0
    %463 = vmatmul.mubr.f32.gmra.mrb[0].mxu0 %v392
    %v464 = vpop.f32.mrb[0].mxu0
    %v465 = vadd.f32 %v389, %v464
    %v466 = vpop.f32.mrb[0].mxu0
    %467 = vdwg.mxu0
    %v468 = vld [vmem:[%s1] sm:$0xff]
    %vm469 = vcmask 80896
    %v470 = vsel %vm469, %v468, 0.0
    %471 = vadd.xlane.f32.xlu0 %v470
    %v472 = vpop.xlane.xlu0 %471
    %v473 = vmax.f32 %v472, 0.0
    %v474 = vmin.f32 %v473, 1.0
    %v475 = vmul.f32 %v474, %v465
    %v476 = vmul.f32 %v475, 0.5
    %v477 = vmul.f32 %v476, 1.442695
    %v478 = vpow.pop %v477
    %v479 = vld [vmem:[%s2] sm:$0xff]
    %481 = vrot.lane.b32.xlu0 %v478, 120
    %v482 = vpop.permute.xlu0 %481
    %v484 = vmul.f32 %v479, %v482
    %v485 = vadd.f32 %v475, %v484
    %v486 = vld [vmem:[%s15] sm:$0xff]
    %488 = vrot.lane.b32.xlu0 %v475, 112
    %v489 = vpop.permute.xlu0 %488
    %v491 = vcombine.high %v486, %v486
    %vm492 = vcmask 31744
    %v493 = vsel %vm492, %v489, 0
    %vm495 = vcmask 1043456
    %v496 = vsel %vm495, %v486, 0
    %v498 = vsel %vm495, %v491, 0
    %500 = vmatprep.subr.mxu0 %v498
    %501 = vmatpush1.msra.mxu0 %v496
    %502 = vmatprep.subr.mxu0 0.0
    %503 = vmatpush1.msra.mxu0 0.0
    %504 = vmatprep.subr.mxu0 0.0
    %505 = vmatpush1.msra.mxu0 0.0
    %506 = vmatprep.subr.mxu0 0.0
    %507 = vmatpush1.msra.mxu0 0.0
    %508 = vmatprep.subr.mxu0 0.0
    %509 = vmatpush1.msra.mxu0 0.0
    %510 = vmatprep.subr.mxu0 0.0
    %511 = vmatpush1.msra.mxu0 0.0
    %512 = vmatprep.subr.mxu0 0.0
    %513 = vmatpush1.msra.mxu0 0.0
    %514 = vmatprep.subr.mxu0 0.0
    %515 = vmatpush1.msra.mxu0 0.0
    %516 = vmatprep.subr.mxu0 0.0
    %517 = vmatpush1.msra.mxu0 0.0
    %518 = vmatprep.subr.mxu0 0.0
    %519 = vmatpush1.msra.mxu0 0.0
    %520 = vmatprep.subr.mxu0 0.0
    %521 = vmatpush1.msra.mxu0 0.0
    %522 = vmatprep.subr.mxu0 0.0
    %523 = vmatpush1.msra.mxu0 0.0
    %524 = vmatprep.subr.mxu0 0.0
    %525 = vmatpush1.msra.mxu0 0.0
    %526 = vmatprep.subr.mxu0 0.0
    %527 = vmatpush1.msra.mxu0 0.0
    %528 = vmatprep.subr.mxu0 0.0
    %529 = vmatpush1.msra.mxu0 0.0
    %530 = vmatprep.subr.mxu0 0.0
    %531 = vmatpush1.msra.mxu0 0.0
    %532 = vmatprep.subr.mxu0 0.0
    %533 = vmatpush1.msra.mxu0 0.0
    %534 = vmatprep.subr.mxu0 0.0
    %535 = vmatpush1.msra.mxu0 0.0
    %536 = vmatprep.subr.mxu0 0.0
    %537 = vmatpush1.msra.mxu0 0.0
    %538 = vmatprep.subr.mxu0 0.0
    %539 = vmatpush1.msra.mxu0 0.0
    %540 = vmatprep.subr.mxu0 0.0
    %541 = vmatpush1.msra.mxu0 0.0
    %542 = vmatprep.subr.mxu0 0.0
    %543 = vmatpush1.msra.mxu0 0.0
    %544 = vmatprep.subr.mxu0 0.0
    %545 = vmatpush1.msra.mxu0 0.0
    %546 = vmatprep.subr.mxu0 0.0
    %547 = vmatpush1.msra.mxu0 0.0
    %548 = vmatprep.subr.mxu0 0.0
    %549 = vmatpush1.msra.mxu0 0.0
    %550 = vmatprep.subr.mxu0 0.0
    %551 = vmatpush1.msra.mxu0 0.0
    %552 = vmatprep.subr.mxu0 0.0
    %553 = vmatpush1.msra.mxu0 0.0
    %554 = vmatprep.subr.mxu0 0.0
    %555 = vmatpush1.msra.mxu0 0.0
    %556 = vmatprep.subr.mxu0 0.0
    %557 = vmatpush1.msra.mxu0 0.0
    %558 = vmatprep.subr.mxu0 0.0
    %559 = vmatpush1.msra.mxu0 0.0
    %560 = vmatprep.subr.mxu0 0.0
    %561 = vmatpush1.msra.mxu0 0.0
    %562 = vmatprep.subr.mxu0 0.0
    %563 = vmatpush1.msra.mxu0 0.0
    %564 = vmatprep.mubr.f32.mxu0 0.0
    %565 = vmatmul.mubr.f32.gmra.mrb[0].mxu0 %v493
    %v566 = vpop.f32.mrb[0].mxu0
    %v567 = vadd.f32 0.0, %v566
    %v568 = vpop.f32.mrb[0].mxu0
    %v569 = vadd.f32 0.0, %v568
    %570 = vdwg.mxu0
    %v571 = vld [vmem:[%s14] sm:$0xff]
    %vm572 = vcmask 64512
    %v574 = vsel %vm572, %v485, 0
    %576 = vmatprep.subr.mxu0 0.0
    %577 = vmatpush1.msra.mxu0 %v571
    %578 = vmatprep.subr.mxu0 0.0
    %579 = vmatpush1.msra.mxu0 0.0
    %580 = vmatprep.subr.mxu0 0.0
    %581 = vmatpush1.msra.mxu0 0.0
    %582 = vmatprep.subr.mxu0 0.0
    %583 = vmatpush1.msra.mxu0 0.0
    %584 = vmatprep.subr.mxu0 0.0
    %585 = vmatpush1.msra.mxu0 0.0
    %586 = vmatprep.subr.mxu0 0.0
    %587 = vmatpush1.msra.mxu0 0.0
    %588 = vmatprep.subr.mxu0 0.0
    %589 = vmatpush1.msra.mxu0 0.0
    %590 = vmatprep.subr.mxu0 0.0
    %591 = vmatpush1.msra.mxu0 0.0
    %592 = vmatprep.subr.mxu0 0.0
    %593 = vmatpush1.msra.mxu0 0.0
    %594 = vmatprep.subr.mxu0 0.0
    %595 = vmatpush1.msra.mxu0 0.0
    %596 = vmatprep.subr.mxu0 0.0
    %597 = vmatpush1.msra.mxu0 0.0
    %598 = vmatprep.subr.mxu0 0.0
    %599 = vmatpush1.msra.mxu0 0.0
    %600 = vmatprep.subr.mxu0 0.0
    %601 = vmatpush1.msra.mxu0 0.0
    %602 = vmatprep.subr.mxu0 0.0
    %603 = vmatpush1.msra.mxu0 0.0
    %604 = vmatprep.subr.mxu0 0.0
    %605 = vmatpush1.msra.mxu0 0.0
    %606 = vmatprep.subr.mxu0 0.0
    %607 = vmatpush1.msra.mxu0 0.0
    %608 = vmatprep.subr.mxu0 0.0
    %609 = vmatpush1.msra.mxu0 0.0
    %610 = vmatprep.subr.mxu0 0.0
    %611 = vmatpush1.msra.mxu0 0.0
    %612 = vmatprep.subr.mxu0 0.0
    %613 = vmatpush1.msra.mxu0 0.0
    %614 = vmatprep.subr.mxu0 0.0
    %615 = vmatpush1.msra.mxu0 0.0
    %616 = vmatprep.subr.mxu0 0.0
    %617 = vmatpush1.msra.mxu0 0.0
    %618 = vmatprep.subr.mxu0 0.0
    %619 = vmatpush1.msra.mxu0 0.0
    %620 = vmatprep.subr.mxu0 0.0
    %621 = vmatpush1.msra.mxu0 0.0
    %622 = vmatprep.subr.mxu0 0.0
    %623 = vmatpush1.msra.mxu0 0.0
    %624 = vmatprep.subr.mxu0 0.0
    %625 = vmatpush1.msra.mxu0 0.0
    %626 = vmatprep.subr.mxu0 0.0
    %627 = vmatpush1.msra.mxu0 0.0
    %628 = vmatprep.subr.mxu0 0.0
    %629 = vmatpush1.msra.mxu0 0.0
    %630 = vmatprep.subr.mxu0 0.0
    %631 = vmatpush1.msra.mxu0 0.0
    %632 = vmatprep.subr.mxu0 0.0
    %633 = vmatpush1.msra.mxu0 0.0
    %634 = vmatprep.subr.mxu0 0.0
    %635 = vmatpush1.msra.mxu0 0.0
    %636 = vmatprep.subr.mxu0 0.0
    %637 = vmatpush1.msra.mxu0 0.0
    %638 = vmatprep.subr.mxu0 0.0
    %639 = vmatpush1.msra.mxu0 0.0
    %640 = vmatprep.mubr.f32.mxu0 0.0
    %641 = vmatmul.mubr.f32.gmra.mrb[0].mxu0 %v574
    %v642 = vpop.f32.mrb[0].mxu0
    %v643 = vadd.f32 %v567, %v642
    %v644 = vpop.f32.mrb[0].mxu0
    %645 = vdwg.mxu0
    %v646 = vld [vmem:[%s16] sm:$0x1]
    %v648 = vlaneseq
    %v649 = vshrl.u32 %v648, 7
    %v650 = vsub.s32 0, %v649
    %v651 = vrot.slane %v646, %v650
    %v653 = vadd.f32 %v643, %v651
    %vm654 = vcmp.gt.f32.partialorder %v653, 0.0
    %v655 = vmin.f32 %v653, 0.0
    %v656 = vmul.f32 %v655, 1.442695
    %v657 = vpow.pop %v656
    %v658 = vsub.f32 %v657, 1.0
    %v659 = vsel %vm654, %v653, %v658
    %v660 = vld [vmem:[%s17] sm:$0xff]
    %v661 = vld [vmem:[%s17 + $0x8] sm:$0xff]
    %v662 = vld [vmem:[%s17 + $0x10] sm:$0xff]
    %v663 = vld [vmem:[%s17 + $0x18] sm:$0xff]
    %v664 = vld [vmem:[%s17 + $0x20] sm:$0xff]
    %v665 = vld [vmem:[%s17 + $0x28] sm:$0xff]
    %v666 = vld [vmem:[%s18] sm:$0x1]
    %v668 = vlaneseq
    %v669 = vshrl.u32 %v668, 7
    %v670 = vsub.s32 0, %v669
    %v671 = vrot.slane %v666, %v670
    %vm673 = vcmask 392192
    %v675 = vsel %vm673, %v659, 0
    %677 = vmatprep.subr.mxu0 0.0
    %678 = vmatpush1.msra.mxu0 %v660
    %679 = vmatprep.subr.mxu0 0.0
    %680 = vmatpush1.msra.mxu0 %v661
    %681 = vmatprep.subr.mxu0 0.0
    %682 = vmatpush1.msra.mxu0 %v662
    %683 = vmatprep.subr.mxu0 0.0
    %684 = vmatpush1.msra.mxu0 %v663
    %685 = vmatprep.subr.mxu0 0.0
    %686 = vmatpush1.msra.mxu0 %v664
    %687 = vmatprep.subr.mxu0 0.0
    %688 = vmatpush1.msra.mxu0 %v665
    %689 = vmatprep.subr.mxu0 0.0
    %690 = vmatpush1.msra.mxu0 0.0
    %691 = vmatprep.subr.mxu0 0.0
    %692 = vmatpush1.msra.mxu0 0.0
    %693 = vmatprep.subr.mxu0 0.0
    %694 = vmatpush1.msra.mxu0 0.0
    %695 = vmatprep.subr.mxu0 0.0
    %696 = vmatpush1.msra.mxu0 0.0
    %697 = vmatprep.subr.mxu0 0.0
    %698 = vmatpush1.msra.mxu0 0.0
    %699 = vmatprep.subr.mxu0 0.0
    %700 = vmatpush1.msra.mxu0 0.0
    %701 = vmatprep.subr.mxu0 0.0
    %702 = vmatpush1.msra.mxu0 0.0
    %703 = vmatprep.subr.mxu0 0.0
    %704 = vmatpush1.msra.mxu0 0.0
    %705 = vmatprep.subr.mxu0 0.0
    %706 = vmatpush1.msra.mxu0 0.0
    %707 = vmatprep.subr.mxu0 0.0
    %708 = vmatpush1.msra.mxu0 0.0
    %709 = vmatprep.subr.mxu0 0.0
    %710 = vmatpush1.msra.mxu0 0.0
    %711 = vmatprep.subr.mxu0 0.0
    %712 = vmatpush1.msra.mxu0 0.0
    %713 = vmatprep.subr.mxu0 0.0
    %714 = vmatpush1.msra.mxu0 0.0
    %715 = vmatprep.subr.mxu0 0.0
    %716 = vmatpush1.msra.mxu0 0.0
    %717 = vmatprep.subr.mxu0 0.0
    %718 = vmatpush1.msra.mxu0 0.0
    %719 = vmatprep.subr.mxu0 0.0
    %720 = vmatpush1.msra.mxu0 0.0
    %721 = vmatprep.subr.mxu0 0.0
    %722 = vmatpush1.msra.mxu0 0.0
    %723 = vmatprep.subr.mxu0 0.0
    %724 = vmatpush1.msra.mxu0 0.0
    %725 = vmatprep.subr.mxu0 0.0
    %726 = vmatpush1.msra.mxu0 0.0
    %727 = vmatprep.subr.mxu0 0.0
    %728 = vmatpush1.msra.mxu0 0.0
    %729 = vmatprep.subr.mxu0 0.0
    %730 = vmatpush1.msra.mxu0 0.0
    %731 = vmatprep.subr.mxu0 0.0
    %732 = vmatpush1.msra.mxu0 0.0
    %733 = vmatprep.subr.mxu0 0.0
    %734 = vmatpush1.msra.mxu0 0.0
    %735 = vmatprep.subr.mxu0 0.0
    %736 = vmatpush1.msra.mxu0 0.0
    %737 = vmatprep.subr.mxu0 0.0
    %738 = vmatpush1.msra.mxu0 0.0
    %739 = vmatprep.subr.mxu0 0.0
    %740 = vmatpush1.msra.mxu0 0.0
    %741 = vmatprep.mubr.f32.mxu0 0.0
    %742 = vmatmul.mubr.f32.gmra.mrb[0].mxu0 %v675
    %v743 = vpop.f32.mrb[0].mxu0
    %v744 = vadd.f32 %v671, %v743
    %v745 = vpop.f32.mrb[0].mxu0
    %746 = vdwg.mxu0
    %vm747 = vcmp.gt.f32.partialorder %v744, 0.0
    %v748 = vmin.f32 %v744, 0.0
    %v749 = vmul.f32 %v748, 1.442695
    %v750 = vpow.pop %v749
    %v751 = vsub.f32 %v750, 1.0
    %v752 = vsel %vm747, %v744, %v751
    %v753 = vld [vmem:[%s19] sm:$0xff]
    %v754 = vld [vmem:[%s19 + $0x8] sm:$0xff]
    %v755 = vld [vmem:[%s19 + $0x10] sm:$0xff]
    %v756 = vld [vmem:[%s19 + $0x18] sm:$0xff]
    %v757 = vld [vmem:[%s19 + $0x20] sm:$0xff]
    %v758 = vld [vmem:[%s19 + $0x28] sm:$0xff]
    %v759 = vld [vmem:[%s20] sm:$0x1]
    %v761 = vlaneseq
    %v762 = vshrl.u32 %v761, 7
    %v763 = vsub.s32 0, %v762
    %v764 = vrot.slane %v759, %v763
    %v767 = vsel %vm673, %v752, 0
    %769 = vmatprep.subr.mxu0 0.0
    %770 = vmatpush1.msra.mxu0 %v753
    %771 = vmatprep.subr.mxu0 0.0
    %772 = vmatpush1.msra.mxu0 %v754
    %773 = vmatprep.subr.mxu0 0.0
    %774 = vmatpush1.msra.mxu0 %v755
    %775 = vmatprep.subr.mxu0 0.0
    %776 = vmatpush1.msra.mxu0 %v756
    %777 = vmatprep.subr.mxu0 0.0
    %778 = vmatpush1.msra.mxu0 %v757
    %779 = vmatprep.subr.mxu0 0.0
    %780 = vmatpush1.msra.mxu0 %v758
    %781 = vmatprep.subr.mxu0 0.0
    %782 = vmatpush1.msra.mxu0 0.0
    %783 = vmatprep.subr.mxu0 0.0
    %784 = vmatpush1.msra.mxu0 0.0
    %785 = vmatprep.subr.mxu0 0.0
    %786 = vmatpush1.msra.mxu0 0.0
    %787 = vmatprep.subr.mxu0 0.0
    %788 = vmatpush1.msra.mxu0 0.0
    %789 = vmatprep.subr.mxu0 0.0
    %790 = vmatpush1.msra.mxu0 0.0
    %791 = vmatprep.subr.mxu0 0.0
    %792 = vmatpush1.msra.mxu0 0.0
    %793 = vmatprep.subr.mxu0 0.0
    %794 = vmatpush1.msra.mxu0 0.0
    %795 = vmatprep.subr.mxu0 0.0
    %796 = vmatpush1.msra.mxu0 0.0
    %797 = vmatprep.subr.mxu0 0.0
    %798 = vmatpush1.msra.mxu0 0.0
    %799 = vmatprep.subr.mxu0 0.0
    %800 = vmatpush1.msra.mxu0 0.0
    %801 = vmatprep.subr.mxu0 0.0
    %802 = vmatpush1.msra.mxu0 0.0
    %803 = vmatprep.subr.mxu0 0.0
    %804 = vmatpush1.msra.mxu0 0.0
    %805 = vmatprep.subr.mxu0 0.0
    %806 = vmatpush1.msra.mxu0 0.0
    %807 = vmatprep.subr.mxu0 0.0
    %808 = vmatpush1.msra.mxu0 0.0
    %809 = vmatprep.subr.mxu0 0.0
    %810 = vmatpush1.msra.mxu0 0.0
    %811 = vmatprep.subr.mxu0 0.0
    %812 = vmatpush1.msra.mxu0 0.0
    %813 = vmatprep.subr.mxu0 0.0
    %814 = vmatpush1.msra.mxu0 0.0
    %815 = vmatprep.subr.mxu0 0.0
    %816 = vmatpush1.msra.mxu0 0.0
    %817 = vmatprep.subr.mxu0 0.0
    %818 = vmatpush1.msra.mxu0 0.0
    %819 = vmatprep.subr.mxu0 0.0
    %820 = vmatpush1.msra.mxu0 0.0
    %821 = vmatprep.subr.mxu0 0.0
    %822 = vmatpush1.msra.mxu0 0.0
    %823 = vmatprep.subr.mxu0 0.0
    %824 = vmatpush1.msra.mxu0 0.0
    %825 = vmatprep.subr.mxu0 0.0
    %826 = vmatpush1.msra.mxu0 0.0
    %827 = vmatprep.subr.mxu0 0.0
    %828 = vmatpush1.msra.mxu0 0.0
    %829 = vmatprep.subr.mxu0 0.0
    %830 = vmatpush1.msra.mxu0 0.0
    %831 = vmatprep.subr.mxu0 0.0
    %832 = vmatpush1.msra.mxu0 0.0
    %833 = vmatprep.mubr.f32.mxu0 0.0
    %834 = vmatmul.mubr.f32.gmra.mrb[0].mxu0 %v767
    %v835 = vpop.f32.mrb[0].mxu0
    %v836 = vadd.f32 %v764, %v835
    %v837 = vpop.f32.mrb[0].mxu0
    %838 = vdwg.mxu0
    %v839 = vmul.f32 %v836, 1.442695
    %v840 = vpow.pop %v839
    %v841 = vmul.f32 %v840, %v485
    %843 = vrot.lane.b32.xlu0 %v836, 120
    %v844 = vpop.permute.xlu0 %843
    %v846 = vadd.f32 %v841, %v844
    %v847 = vsel %vm572, %v836, 0.0
    %848 = vadd.xlane.f32.xlu0 %v847
    %v849 = vpop.xlane.xlu0 %848
    %v850 = vadd.f32 %v849, 0.0
    %s851 = scalar_lea.vmem %s14, 8
    %v852 = vld [vmem:[%s851] sm:$0xff]
    %854 = vrot.lane.b32.xlu0 %v567, 80
    %v855 = vpop.permute.xlu0 %854
    %v858 = vsel %vm572, %v846, 0
    %860 = vmatprep.subr.mxu0 0.0
    %861 = vmatpush1.msra.mxu0 %v852
    %862 = vmatprep.subr.mxu0 0.0
    %863 = vmatpush1.msra.mxu0 0.0
    %864 = vmatprep.subr.mxu0 0.0
    %865 = vmatpush1.msra.mxu0 0.0
    %866 = vmatprep.subr.mxu0 0.0
    %867 = vmatpush1.msra.mxu0 0.0
    %868 = vmatprep.subr.mxu0 0.0
    %869 = vmatpush1.msra.mxu0 0.0
    %870 = vmatprep.subr.mxu0 0.0
    %871 = vmatpush1.msra.mxu0 0.0
    %872 = vmatprep.subr.mxu0 0.0
    %873 = vmatpush1.msra.mxu0 0.0
    %874 = vmatprep.subr.mxu0 0.0
    %875 = vmatpush1.msra.mxu0 0.0
    %876 = vmatprep.subr.mxu0 0.0
    %877 = vmatpush1.msra.mxu0 0.0
    %878 = vmatprep.subr.mxu0 0.0
    %879 = vmatpush1.msra.mxu0 0.0
    %880 = vmatprep.subr.mxu0 0.0
    %881 = vmatpush1.msra.mxu0 0.0
    %882 = vmatprep.subr.mxu0 0.0
    %883 = vmatpush1.msra.mxu0 0.0
    %884 = vmatprep.subr.mxu0 0.0
    %885 = vmatpush1.msra.mxu0 0.0
    %886 = vmatprep.subr.mxu0 0.0
    %887 = vmatpush1.msra.mxu0 0.0
    %888 = vmatprep.subr.mxu0 0.0
    %889 = vmatpush1.msra.mxu0 0.0
    %890 = vmatprep.subr.mxu0 0.0
    %891 = vmatpush1.msra.mxu0 0.0
    %892 = vmatprep.subr.mxu0 0.0
    %893 = vmatpush1.msra.mxu0 0.0
    %894 = vmatprep.subr.mxu0 0.0
    %895 = vmatpush1.msra.mxu0 0.0
    %896 = vmatprep.subr.mxu0 0.0
    %897 = vmatpush1.msra.mxu0 0.0
    %898 = vmatprep.subr.mxu0 0.0
    %899 = vmatpush1.msra.mxu0 0.0
    %900 = vmatprep.subr.mxu0 0.0
    %901 = vmatpush1.msra.mxu0 0.0
    %902 = vmatprep.subr.mxu0 0.0
    %903 = vmatpush1.msra.mxu0 0.0
    %904 = vmatprep.subr.mxu0 0.0
    %905 = vmatpush1.msra.mxu0 0.0
    %906 = vmatprep.subr.mxu0 0.0
    %907 = vmatpush1.msra.mxu0 0.0
    %908 = vmatprep.subr.mxu0 0.0
    %909 = vmatpush1.msra.mxu0 0.0
    %910 = vmatprep.subr.mxu0 0.0
    %911 = vmatpush1.msra.mxu0 0.0
    %912 = vmatprep.subr.mxu0 0.0
    %913 = vmatpush1.msra.mxu0 0.0
    %914 = vmatprep.subr.mxu0 0.0
    %915 = vmatpush1.msra.mxu0 0.0
    %916 = vmatprep.subr.mxu0 0.0
    %917 = vmatpush1.msra.mxu0 0.0
    %918 = vmatprep.subr.mxu0 0.0
    %919 = vmatpush1.msra.mxu0 0.0
    %920 = vmatprep.subr.mxu0 0.0
    %921 = vmatpush1.msra.mxu0 0.0
    %922 = vmatprep.subr.mxu0 0.0
    %923 = vmatpush1.msra.mxu0 0.0
    %924 = vmatprep.mubr.f32.mxu0 0.0
    %925 = vmatmul.mubr.f32.gmra.mrb[0].mxu0 %v858
    %v926 = vpop.f32.mrb[0].mxu0
    %v927 = vadd.f32 %v855, %v926
    %v928 = vpop.f32.mrb[0].mxu0
    %929 = vdwg.mxu0
    %s930 = scalar_lea.vmem %s16, 1
    %v931 = vld [vmem:[%s930] sm:$0x1]
    %v933 = vlaneseq
    %v934 = vshrl.u32 %v933, 7
    %v935 = vsub.s32 0, %v934
    %v936 = vrot.slane %v931, %v935
    %v938 = vadd.f32 %v927, %v936
    %vm939 = vcmp.gt.f32.partialorder %v938, 0.0
    %v940 = vmin.f32 %v938, 0.0
    %v941 = vmul.f32 %v940, 1.442695
    %v942 = vpow.pop %v941
    %v943 = vsub.f32 %v942, 1.0
    %v944 = vsel %vm939, %v938, %v943
    %s945 = scalar_lea.vmem %s17, 48
    %v946 = vld [vmem:[%s945] sm:$0xff]
    %v947 = vld [vmem:[%s945 + $0x8] sm:$0xff]
    %v948 = vld [vmem:[%s945 + $0x10] sm:$0xff]
    %v949 = vld [vmem:[%s945 + $0x18] sm:$0xff]
    %v950 = vld [vmem:[%s945 + $0x20] sm:$0xff]
    %v951 = vld [vmem:[%s945 + $0x28] sm:$0xff]
    %s952 = scalar_lea.vmem %s18, 1
    %v953 = vld [vmem:[%s952] sm:$0x1]
    %v955 = vlaneseq
    %v956 = vshrl.u32 %v955, 7
    %v957 = vsub.s32 0, %v956
    %v958 = vrot.slane %v953, %v957
    %v961 = vsel %vm673, %v944, 0
    %963 = vmatprep.subr.mxu0 0.0
    %964 = vmatpush1.msra.mxu0 %v946
    %965 = vmatprep.subr.mxu0 0.0
    %966 = vmatpush1.msra.mxu0 %v947
    %967 = vmatprep.subr.mxu0 0.0
    %968 = vmatpush1.msra.mxu0 %v948
    %969 = vmatprep.subr.mxu0 0.0
    %970 = vmatpush1.msra.mxu0 %v949
    %971 = vmatprep.subr.mxu0 0.0
    %972 = vmatpush1.msra.mxu0 %v950
    %973 = vmatprep.subr.mxu0 0.0
    %974 = vmatpush1.msra.mxu0 %v951
    %975 = vmatprep.subr.mxu0 0.0
    %976 = vmatpush1.msra.mxu0 0.0
    %977 = vmatprep.subr.mxu0 0.0
    %978 = vmatpush1.msra.mxu0 0.0
    %979 = vmatprep.subr.mxu0 0.0
    %980 = vmatpush1.msra.mxu0 0.0
    %981 = vmatprep.subr.mxu0 0.0
    %982 = vmatpush1.msra.mxu0 0.0
    %983 = vmatprep.subr.mxu0 0.0
    %984 = vmatpush1.msra.mxu0 0.0
    %985 = vmatprep.subr.mxu0 0.0
    %986 = vmatpush1.msra.mxu0 0.0
    %987 = vmatprep.subr.mxu0 0.0
    %988 = vmatpush1.msra.mxu0 0.0
    %989 = vmatprep.subr.mxu0 0.0
    %990 = vmatpush1.msra.mxu0 0.0
    %991 = vmatprep.subr.mxu0 0.0
    %992 = vmatpush1.msra.mxu0 0.0
    %993 = vmatprep.subr.mxu0 0.0
    %994 = vmatpush1.msra.mxu0 0.0
    %995 = vmatprep.subr.mxu0 0.0
    %996 = vmatpush1.msra.mxu0 0.0
    %997 = vmatprep.subr.mxu0 0.0
    %998 = vmatpush1.msra.mxu0 0.0
    %999 = vmatprep.subr.mxu0 0.0
    %1000 = vmatpush1.msra.mxu0 0.0
    %1001 = vmatprep.subr.mxu0 0.0
    %1002 = vmatpush1.msra.mxu0 0.0
    %1003 = vmatprep.subr.mxu0 0.0
    %1004 = vmatpush1.msra.mxu0 0.0
    %1005 = vmatprep.subr.mxu0 0.0
    %1006 = vmatpush1.msra.mxu0 0.0
    %1007 = vmatprep.subr.mxu0 0.0
    %1008 = vmatpush1.msra.mxu0 0.0
    %1009 = vmatprep.subr.mxu0 0.0
    %1010 = vmatpush1.msra.mxu0 0.0
    %1011 = vmatprep.subr.mxu0 0.0
    %1012 = vmatpush1.msra.mxu0 0.0
    %1013 = vmatprep.subr.mxu0 0.0
    %1014 = vmatpush1.msra.mxu0 0.0
    %1015 = vmatprep.subr.mxu0 0.0
    %1016 = vmatpush1.msra.mxu0 0.0
    %1017 = vmatprep.subr.mxu0 0.0
    %1018 = vmatpush1.msra.mxu0 0.0
    %1019 = vmatprep.subr.mxu0 0.0
    %1020 = vmatpush1.msra.mxu0 0.0
    %1021 = vmatprep.subr.mxu0 0.0
    %1022 = vmatpush1.msra.mxu0 0.0
    %1023 = vmatprep.subr.mxu0 0.0
    %1024 = vmatpush1.msra.mxu0 0.0
    %1025 = vmatprep.subr.mxu0 0.0
    %1026 = vmatpush1.msra.mxu0 0.0
    %1027 = vmatprep.mubr.f32.mxu0 0.0
    %1028 = vmatmul.mubr.f32.gmra.mrb[0].mxu0 %v961
    %v1029 = vpop.f32.mrb[0].mxu0
    %v1030 = vadd.f32 %v958, %v1029
    %v1031 = vpop.f32.mrb[0].mxu0
    %1032 = vdwg.mxu0
    %vm1033 = vcmp.gt.f32.partialorder %v1030, 0.0
    %v1034 = vmin.f32 %v1030, 0.0
    %v1035 = vmul.f32 %v1034, 1.442695
    %v1036 = vpow.pop %v1035
    %v1037 = vsub.f32 %v1036, 1.0
    %v1038 = vsel %vm1033, %v1030, %v1037
    %s1039 = scalar_lea.vmem %s19, 48
    %v1040 = vld [vmem:[%s1039] sm:$0xff]
    %v1041 = vld [vmem:[%s1039 + $0x8] sm:$0xff]
    %v1042 = vld [vmem:[%s1039 + $0x10] sm:$0xff]
    %v1043 = vld [vmem:[%s1039 + $0x18] sm:$0xff]
    %v1044 = vld [vmem:[%s1039 + $0x20] sm:$0xff]
    %v1045 = vld [vmem:[%s1039 + $0x28] sm:$0xff]
    %s1046 = scalar_lea.vmem %s20, 1
    %v1047 = vld [vmem:[%s1046] sm:$0x1]
    %v1049 = vlaneseq
    %v1050 = vshrl.u32 %v1049, 7
    %v1051 = vsub.s32 0, %v1050
    %v1052 = vrot.slane %v1047, %v1051
    %v1055 = vsel %vm673, %v1038, 0
    %1057 = vmatprep.subr.mxu0 0.0
    %1058 = vmatpush1.msra.mxu0 %v1040
    %1059 = vmatprep.subr.mxu0 0.0
    %1060 = vmatpush1.msra.mxu0 %v1041
    %1061 = vmatprep.subr.mxu0 0.0
    %1062 = vmatpush1.msra.mxu0 %v1042
    %1063 = vmatprep.subr.mxu0 0.0
    %1064 = vmatpush1.msra.mxu0 %v1043
    %1065 = vmatprep.subr.mxu0 0.0
    %1066 = vmatpush1.msra.mxu0 %v1044
    %1067 = vmatprep.subr.mxu0 0.0
    %1068 = vmatpush1.msra.mxu0 %v1045
    %1069 = vmatprep.subr.mxu0 0.0
    %1070 = vmatpush1.msra.mxu0 0.0
    %1071 = vmatprep.subr.mxu0 0.0
    %1072 = vmatpush1.msra.mxu0 0.0
    %1073 = vmatprep.subr.mxu0 0.0
    %1074 = vmatpush1.msra.mxu0 0.0
    %1075 = vmatprep.subr.mxu0 0.0
    %1076 = vmatpush1.msra.mxu0 0.0
    %1077 = vmatprep.subr.mxu0 0.0
    %1078 = vmatpush1.msra.mxu0 0.0
    %1079 = vmatprep.subr.mxu0 0.0
    %1080 = vmatpush1.msra.mxu0 0.0
    %1081 = vmatprep.subr.mxu0 0.0
    %1082 = vmatpush1.msra.mxu0 0.0
    %1083 = vmatprep.subr.mxu0 0.0
    %1084 = vmatpush1.msra.mxu0 0.0
    %1085 = vmatprep.subr.mxu0 0.0
    %1086 = vmatpush1.msra.mxu0 0.0
    %1087 = vmatprep.subr.mxu0 0.0
    %1088 = vmatpush1.msra.mxu0 0.0
    %1089 = vmatprep.subr.mxu0 0.0
    %1090 = vmatpush1.msra.mxu0 0.0
    %1091 = vmatprep.subr.mxu0 0.0
    %1092 = vmatpush1.msra.mxu0 0.0
    %1093 = vmatprep.subr.mxu0 0.0
    %1094 = vmatpush1.msra.mxu0 0.0
    %1095 = vmatprep.subr.mxu0 0.0
    %1096 = vmatpush1.msra.mxu0 0.0
    %1097 = vmatprep.subr.mxu0 0.0
    %1098 = vmatpush1.msra.mxu0 0.0
    %1099 = vmatprep.subr.mxu0 0.0
    %1100 = vmatpush1.msra.mxu0 0.0
    %1101 = vmatprep.subr.mxu0 0.0
    %1102 = vmatpush1.msra.mxu0 0.0
    %1103 = vmatprep.subr.mxu0 0.0
    %1104 = vmatpush1.msra.mxu0 0.0
    %1105 = vmatprep.subr.mxu0 0.0
    %1106 = vmatpush1.msra.mxu0 0.0
    %1107 = vmatprep.subr.mxu0 0.0
    %1108 = vmatpush1.msra.mxu0 0.0
    %1109 = vmatprep.subr.mxu0 0.0
    %1110 = vmatpush1.msra.mxu0 0.0
    %1111 = vmatprep.subr.mxu0 0.0
    %1112 = vmatpush1.msra.mxu0 0.0
    %1113 = vmatprep.subr.mxu0 0.0
    %1114 = vmatpush1.msra.mxu0 0.0
    %1115 = vmatprep.subr.mxu0 0.0
    %1116 = vmatpush1.msra.mxu0 0.0
    %1117 = vmatprep.subr.mxu0 0.0
    %1118 = vmatpush1.msra.mxu0 0.0
    %1119 = vmatprep.subr.mxu0 0.0
    %1120 = vmatpush1.msra.mxu0 0.0
    %1121 = vmatprep.mubr.f32.mxu0 0.0
    %1122 = vmatmul.mubr.f32.gmra.mrb[0].mxu0 %v1055
    %v1123 = vpop.f32.mrb[0].mxu0
    %v1124 = vadd.f32 %v1052, %v1123
    %v1125 = vpop.f32.mrb[0].mxu0
    %1126 = vdwg.mxu0
    %v1127 = vmul.f32 %v1124, 1.442695
    %v1128 = vpow.pop %v1127
    %v1129 = vmul.f32 %v1128, %v846
    %1131 = vrot.lane.b32.xlu0 %v1124, 120
    %v1132 = vpop.permute.xlu0 %1131
    %v1134 = vadd.f32 %v1129, %v1132
    %v1135 = vsel %vm572, %v1124, 0.0
    %1136 = vadd.xlane.f32.xlu0 %v1135
    %v1137 = vpop.xlane.xlu0 %1136
    %v1138 = vadd.f32 %v850, %v1137
    %s1139 = scalar_lea.vmem %s14, 16
    %v1140 = vld [vmem:[%s1139] sm:$0xff]
    %1142 = vrot.lane.b32.xlu0 %v567, 32
    %v1143 = vpop.permute.xlu0 %1142
    %1144 = vrot.lane.b32.xlu0 %v569, 32
    %v1145 = vpop.permute.xlu0 %1144
    %vm1146 = vcmask 261120
    %v1147 = vsel %vm1146, %v1143, %v1145
    %v1150 = vsel %vm572, %v1134, 0
    %1152 = vmatprep.subr.mxu0 0.0
    %1153 = vmatpush1.msra.mxu0 %v1140
    %1154 = vmatprep.subr.mxu0 0.0
    %1155 = vmatpush1.msra.mxu0 0.0
    %1156 = vmatprep.subr.mxu0 0.0
    %1157 = vmatpush1.msra.mxu0 0.0
    %1158 = vmatprep.subr.mxu0 0.0
    %1159 = vmatpush1.msra.mxu0 0.0
    %1160 = vmatprep.subr.mxu0 0.0
    %1161 = vmatpush1.msra.mxu0 0.0
    %1162 = vmatprep.subr.mxu0 0.0
    %1163 = vmatpush1.msra.mxu0 0.0
    %1164 = vmatprep.subr.mxu0 0.0
    %1165 = vmatpush1.msra.mxu0 0.0
    %1166 = vmatprep.subr.mxu0 0.0
    %1167 = vmatpush1.msra.mxu0 0.0
    %1168 = vmatprep.subr.mxu0 0.0
    %1169 = vmatpush1.msra.mxu0 0.0
    %1170 = vmatprep.subr.mxu0 0.0
    %1171 = vmatpush1.msra.mxu0 0.0
    %1172 = vmatprep.subr.mxu0 0.0
    %1173 = vmatpush1.msra.mxu0 0.0
    %1174 = vmatprep.subr.mxu0 0.0
    %1175 = vmatpush1.msra.mxu0 0.0
    %1176 = vmatprep.subr.mxu0 0.0
    %1177 = vmatpush1.msra.mxu0 0.0
    %1178 = vmatprep.subr.mxu0 0.0
    %1179 = vmatpush1.msra.mxu0 0.0
    %1180 = vmatprep.subr.mxu0 0.0
    %1181 = vmatpush1.msra.mxu0 0.0
    %1182 = vmatprep.subr.mxu0 0.0
    %1183 = vmatpush1.msra.mxu0 0.0
    %1184 = vmatprep.subr.mxu0 0.0
    %1185 = vmatpush1.msra.mxu0 0.0
    %1186 = vmatprep.subr.mxu0 0.0
    %1187 = vmatpush1.msra.mxu0 0.0
    %1188 = vmatprep.subr.mxu0 0.0
    %1189 = vmatpush1.msra.mxu0 0.0
    %1190 = vmatprep.subr.mxu0 0.0
    %1191 = vmatpush1.msra.mxu0 0.0
    %1192 = vmatprep.subr.mxu0 0.0
    %1193 = vmatpush1.msra.mxu0 0.0
    %1194 = vmatprep.subr.mxu0 0.0
    %1195 = vmatpush1.msra.mxu0 0.0
    %1196 = vmatprep.subr.mxu0 0.0
    %1197 = vmatpush1.msra.mxu0 0.0
    %1198 = vmatprep.subr.mxu0 0.0
    %1199 = vmatpush1.msra.mxu0 0.0
    %1200 = vmatprep.subr.mxu0 0.0
    %1201 = vmatpush1.msra.mxu0 0.0
    %1202 = vmatprep.subr.mxu0 0.0
    %1203 = vmatpush1.msra.mxu0 0.0
    %1204 = vmatprep.subr.mxu0 0.0
    %1205 = vmatpush1.msra.mxu0 0.0
    %1206 = vmatprep.subr.mxu0 0.0
    %1207 = vmatpush1.msra.mxu0 0.0
    %1208 = vmatprep.subr.mxu0 0.0
    %1209 = vmatpush1.msra.mxu0 0.0
    %1210 = vmatprep.subr.mxu0 0.0
    %1211 = vmatpush1.msra.mxu0 0.0
    %1212 = vmatprep.subr.mxu0 0.0
    %1213 = vmatpush1.msra.mxu0 0.0
    %1214 = vmatprep.subr.mxu0 0.0
    %1215 = vmatpush1.msra.mxu0 0.0
    %1216 = vmatprep.mubr.f32.mxu0 0.0
    %1217 = vmatmul.mubr.f32.gmra.mrb[0].mxu0 %v1150
    %v1218 = vpop.f32.mrb[0].mxu0
    %v1219 = vadd.f32 %v1147, %v1218
    %v1220 = vpop.f32.mrb[0].mxu0
    %1221 = vdwg.mxu0
    %s1222 = scalar_lea.vmem %s16, 2
    %v1223 = vld [vmem:[%s1222] sm:$0x1]
    %v1225 = vlaneseq
    %v1226 = vshrl.u32 %v1225, 7
    %v1227 = vsub.s32 0, %v1226
    %v1228 = vrot.slane %v1223, %v1227
    %v1230 = vadd.f32 %v1219, %v1228
    %vm1231 = vcmp.gt.f32.partialorder %v1230, 0.0
    %v1232 = vmin.f32 %v1230, 0.0
    %v1233 = vmul.f32 %v1232, 1.442695
    %v1234 = vpow.pop %v1233
    %v1235 = vsub.f32 %v1234, 1.0
    %v1236 = vsel %vm1231, %v1230, %v1235
    %s1237 = scalar_lea.vmem %s17, 96
    %v1238 = vld [vmem:[%s1237] sm:$0xff]
    %v1239 = vld [vmem:[%s1237 + $0x8] sm:$0xff]
    %v1240 = vld [vmem:[%s1237 + $0x10] sm:$0xff]
    %v1241 = vld [vmem:[%s1237 + $0x18] sm:$0xff]
    %v1242 = vld [vmem:[%s1237 + $0x20] sm:$0xff]
    %v1243 = vld [vmem:[%s1237 + $0x28] sm:$0xff]
    %s1244 = scalar_lea.vmem %s18, 2
    %v1245 = vld [vmem:[%s1244] sm:$0x1]
    %v1247 = vlaneseq
    %v1248 = vshrl.u32 %v1247, 7
    %v1249 = vsub.s32 0, %v1248
    %v1250 = vrot.slane %v1245, %v1249
    %v1253 = vsel %vm673, %v1236, 0
    %1255 = vmatprep.subr.mxu0 0.0
    %1256 = vmatpush1.msra.mxu0 %v1238
    %1257 = vmatprep.subr.mxu0 0.0
    %1258 = vmatpush1.msra.mxu0 %v1239
    %1259 = vmatprep.subr.mxu0 0.0
    %1260 = vmatpush1.msra.mxu0 %v1240
    %1261 = vmatprep.subr.mxu0 0.0
    %1262 = vmatpush1.msra.mxu0 %v1241
    %1263 = vmatprep.subr.mxu0 0.0
    %1264 = vmatpush1.msra.mxu0 %v1242
    %1265 = vmatprep.subr.mxu0 0.0
    %1266 = vmatpush1.msra.mxu0 %v1243
    %1267 = vmatprep.subr.mxu0 0.0
    %1268 = vmatpush1.msra.mxu0 0.0
    %1269 = vmatprep.subr.mxu0 0.0
    %1270 = vmatpush1.msra.mxu0 0.0
    %1271 = vmatprep.subr.mxu0 0.0
    %1272 = vmatpush1.msra.mxu0 0.0
    %1273 = vmatprep.subr.mxu0 0.0
    %1274 = vmatpush1.msra.mxu0 0.0
    %1275 = vmatprep.subr.mxu0 0.0
    %1276 = vmatpush1.msra.mxu0 0.0
    %1277 = vmatprep.subr.mxu0 0.0
    %1278 = vmatpush1.msra.mxu0 0.0
    %1279 = vmatprep.subr.mxu0 0.0
    %1280 = vmatpush1.msra.mxu0 0.0
    %1281 = vmatprep.subr.mxu0 0.0
    %1282 = vmatpush1.msra.mxu0 0.0
    %1283 = vmatprep.subr.mxu0 0.0
    %1284 = vmatpush1.msra.mxu0 0.0
    %1285 = vmatprep.subr.mxu0 0.0
    %1286 = vmatpush1.msra.mxu0 0.0
    %1287 = vmatprep.subr.mxu0 0.0
    %1288 = vmatpush1.msra.mxu0 0.0
    %1289 = vmatprep.subr.mxu0 0.0
    %1290 = vmatpush1.msra.mxu0 0.0
    %1291 = vmatprep.subr.mxu0 0.0
    %1292 = vmatpush1.msra.mxu0 0.0
    %1293 = vmatprep.subr.mxu0 0.0
    %1294 = vmatpush1.msra.mxu0 0.0
    %1295 = vmatprep.subr.mxu0 0.0
    %1296 = vmatpush1.msra.mxu0 0.0
    %1297 = vmatprep.subr.mxu0 0.0
    %1298 = vmatpush1.msra.mxu0 0.0
    %1299 = vmatprep.subr.mxu0 0.0
    %1300 = vmatpush1.msra.mxu0 0.0
    %1301 = vmatprep.subr.mxu0 0.0
    %1302 = vmatpush1.msra.mxu0 0.0
    %1303 = vmatprep.subr.mxu0 0.0
    %1304 = vmatpush1.msra.mxu0 0.0
    %1305 = vmatprep.subr.mxu0 0.0
    %1306 = vmatpush1.msra.mxu0 0.0
    %1307 = vmatprep.subr.mxu0 0.0
    %1308 = vmatpush1.msra.mxu0 0.0
    %1309 = vmatprep.subr.mxu0 0.0
    %1310 = vmatpush1.msra.mxu0 0.0
    %1311 = vmatprep.subr.mxu0 0.0
    %1312 = vmatpush1.msra.mxu0 0.0
    %1313 = vmatprep.subr.mxu0 0.0
    %1314 = vmatpush1.msra.mxu0 0.0
    %1315 = vmatprep.subr.mxu0 0.0
    %1316 = vmatpush1.msra.mxu0 0.0
    %1317 = vmatprep.subr.mxu0 0.0
    %1318 = vmatpush1.msra.mxu0 0.0
    %1319 = vmatprep.mubr.f32.mxu0 0.0
    %1320 = vmatmul.mubr.f32.gmra.mrb[0].mxu0 %v1253
    %v1321 = vpop.f32.mrb[0].mxu0
    %v1322 = vadd.f32 %v1250, %v1321
    %v1323 = vpop.f32.mrb[0].mxu0
    %1324 = vdwg.mxu0
    %vm1325 = vcmp.gt.f32.partialorder %v1322, 0.0
    %v1326 = vmin.f32 %v1322, 0.0
    %v1327 = vmul.f32 %v1326, 1.442695
    %v1328 = vpow.pop %v1327
    %v1329 = vsub.f32 %v1328, 1.0
    %v1330 = vsel %vm1325, %v1322, %v1329
    %s1331 = scalar_lea.vmem %s19, 96
    %v1332 = vld [vmem:[%s1331] sm:$0xff]
    %v1333 = vld [vmem:[%s1331 + $0x8] sm:$0xff]
    %v1334 = vld [vmem:[%s1331 + $0x10] sm:$0xff]
    %v1335 = vld [vmem:[%s1331 + $0x18] sm:$0xff]
    %v1336 = vld [vmem:[%s1331 + $0x20] sm:$0xff]
    %v1337 = vld [vmem:[%s1331 + $0x28] sm:$0xff]
    %s1338 = scalar_lea.vmem %s20, 2
    %v1339 = vld [vmem:[%s1338] sm:$0x1]
    %v1341 = vlaneseq
    %v1342 = vshrl.u32 %v1341, 7
    %v1343 = vsub.s32 0, %v1342
    %v1344 = vrot.slane %v1339, %v1343
    %v1347 = vsel %vm673, %v1330, 0
    %1349 = vmatprep.subr.mxu0 0.0
    %1350 = vmatpush1.msra.mxu0 %v1332
    %1351 = vmatprep.subr.mxu0 0.0
    %1352 = vmatpush1.msra.mxu0 %v1333
    %1353 = vmatprep.subr.mxu0 0.0
    %1354 = vmatpush1.msra.mxu0 %v1334
    %1355 = vmatprep.subr.mxu0 0.0
    %1356 = vmatpush1.msra.mxu0 %v1335
    %1357 = vmatprep.subr.mxu0 0.0
    %1358 = vmatpush1.msra.mxu0 %v1336
    %1359 = vmatprep.subr.mxu0 0.0
    %1360 = vmatpush1.msra.mxu0 %v1337
    %1361 = vmatprep.subr.mxu0 0.0
    %1362 = vmatpush1.msra.mxu0 0.0
    %1363 = vmatprep.subr.mxu0 0.0
    %1364 = vmatpush1.msra.mxu0 0.0
    %1365 = vmatprep.subr.mxu0 0.0
    %1366 = vmatpush1.msra.mxu0 0.0
    %1367 = vmatprep.subr.mxu0 0.0
    %1368 = vmatpush1.msra.mxu0 0.0
    %1369 = vmatprep.subr.mxu0 0.0
    %1370 = vmatpush1.msra.mxu0 0.0
    %1371 = vmatprep.subr.mxu0 0.0
    %1372 = vmatpush1.msra.mxu0 0.0
    %1373 = vmatprep.subr.mxu0 0.0
    %1374 = vmatpush1.msra.mxu0 0.0
    %1375 = vmatprep.subr.mxu0 0.0
    %1376 = vmatpush1.msra.mxu0 0.0
    %1377 = vmatprep.subr.mxu0 0.0
    %1378 = vmatpush1.msra.mxu0 0.0
    %1379 = vmatprep.subr.mxu0 0.0
    %1380 = vmatpush1.msra.mxu0 0.0
    %1381 = vmatprep.subr.mxu0 0.0
    %1382 = vmatpush1.msra.mxu0 0.0
    %1383 = vmatprep.subr.mxu0 0.0
    %1384 = vmatpush1.msra.mxu0 0.0
    %1385 = vmatprep.subr.mxu0 0.0
    %1386 = vmatpush1.msra.mxu0 0.0
    %1387 = vmatprep.subr.mxu0 0.0
    %1388 = vmatpush1.msra.mxu0 0.0
    %1389 = vmatprep.subr.mxu0 0.0
    %1390 = vmatpush1.msra.mxu0 0.0
    %1391 = vmatprep.subr.mxu0 0.0
    %1392 = vmatpush1.msra.mxu0 0.0
    %1393 = vmatprep.subr.mxu0 0.0
    %1394 = vmatpush1.msra.mxu0 0.0
    %1395 = vmatprep.subr.mxu0 0.0
    %1396 = vmatpush1.msra.mxu0 0.0
    %1397 = vmatprep.subr.mxu0 0.0
    %1398 = vmatpush1.msra.mxu0 0.0
    %1399 = vmatprep.subr.mxu0 0.0
    %1400 = vmatpush1.msra.mxu0 0.0
    %1401 = vmatprep.subr.mxu0 0.0
    %1402 = vmatpush1.msra.mxu0 0.0
    %1403 = vmatprep.subr.mxu0 0.0
    %1404 = vmatpush1.msra.mxu0 0.0
    %1405 = vmatprep.subr.mxu0 0.0
    %1406 = vmatpush1.msra.mxu0 0.0
    %1407 = vmatprep.subr.mxu0 0.0
    %1408 = vmatpush1.msra.mxu0 0.0
    %1409 = vmatprep.subr.mxu0 0.0
    %1410 = vmatpush1.msra.mxu0 0.0
    %1411 = vmatprep.subr.mxu0 0.0
    %1412 = vmatpush1.msra.mxu0 0.0
    %1413 = vmatprep.mubr.f32.mxu0 0.0
    %1414 = vmatmul.mubr.f32.gmra.mrb[0].mxu0 %v1347
    %v1415 = vpop.f32.mrb[0].mxu0
    %v1416 = vadd.f32 %v1344, %v1415
    %v1417 = vpop.f32.mrb[0].mxu0
    %1418 = vdwg.mxu0
    %v1419 = vmul.f32 %v1416, 1.442695
    %v1420 = vpow.pop %v1419
    %v1421 = vmul.f32 %v1420, %v1134
    %1423 = vrot.lane.b32.xlu0 %v1416, 120
    %v1424 = vpop.permute.xlu0 %1423
    %v1426 = vadd.f32 %v1421, %v1424
    %v1427 = vsel %vm572, %v1416, 0.0
    %1428 = vadd.xlane.f32.xlu0 %v1427
    %v1429 = vpop.xlane.xlu0 %1428
    %v1430 = vadd.f32 %v1138, %v1429
    %v1431 = vld [vmem:[%s21] sm:$0xff]
    %v1433 = vsel %vm572, %v1426, 0
    %1435 = vmatprep.subr.mxu0 0.0
    %1436 = vmatpush1.msra.mxu0 %v1431
    %1437 = vmatprep.subr.mxu0 0.0
    %1438 = vmatpush1.msra.mxu0 0.0
    %1439 = vmatprep.subr.mxu0 0.0
    %1440 = vmatpush1.msra.mxu0 0.0
    %1441 = vmatprep.subr.mxu0 0.0
    %1442 = vmatpush1.msra.mxu0 0.0
    %1443 = vmatprep.subr.mxu0 0.0
    %1444 = vmatpush1.msra.mxu0 0.0
    %1445 = vmatprep.subr.mxu0 0.0
    %1446 = vmatpush1.msra.mxu0 0.0
    %1447 = vmatprep.subr.mxu0 0.0
    %1448 = vmatpush1.msra.mxu0 0.0
    %1449 = vmatprep.subr.mxu0 0.0
    %1450 = vmatpush1.msra.mxu0 0.0
    %1451 = vmatprep.subr.mxu0 0.0
    %1452 = vmatpush1.msra.mxu0 0.0
    %1453 = vmatprep.subr.mxu0 0.0
    %1454 = vmatpush1.msra.mxu0 0.0
    %1455 = vmatprep.subr.mxu0 0.0
    %1456 = vmatpush1.msra.mxu0 0.0
    %1457 = vmatprep.subr.mxu0 0.0
    %1458 = vmatpush1.msra.mxu0 0.0
    %1459 = vmatprep.subr.mxu0 0.0
    %1460 = vmatpush1.msra.mxu0 0.0
    %1461 = vmatprep.subr.mxu0 0.0
    %1462 = vmatpush1.msra.mxu0 0.0
    %1463 = vmatprep.subr.mxu0 0.0
    %1464 = vmatpush1.msra.mxu0 0.0
    %1465 = vmatprep.subr.mxu0 0.0
    %1466 = vmatpush1.msra.mxu0 0.0
    %1467 = vmatprep.subr.mxu0 0.0
    %1468 = vmatpush1.msra.mxu0 0.0
    %1469 = vmatprep.subr.mxu0 0.0
    %1470 = vmatpush1.msra.mxu0 0.0
    %1471 = vmatprep.subr.mxu0 0.0
    %1472 = vmatpush1.msra.mxu0 0.0
    %1473 = vmatprep.subr.mxu0 0.0
    %1474 = vmatpush1.msra.mxu0 0.0
    %1475 = vmatprep.subr.mxu0 0.0
    %1476 = vmatpush1.msra.mxu0 0.0
    %1477 = vmatprep.subr.mxu0 0.0
    %1478 = vmatpush1.msra.mxu0 0.0
    %1479 = vmatprep.subr.mxu0 0.0
    %1480 = vmatpush1.msra.mxu0 0.0
    %1481 = vmatprep.subr.mxu0 0.0
    %1482 = vmatpush1.msra.mxu0 0.0
    %1483 = vmatprep.subr.mxu0 0.0
    %1484 = vmatpush1.msra.mxu0 0.0
    %1485 = vmatprep.subr.mxu0 0.0
    %1486 = vmatpush1.msra.mxu0 0.0
    %1487 = vmatprep.subr.mxu0 0.0
    %1488 = vmatpush1.msra.mxu0 0.0
    %1489 = vmatprep.subr.mxu0 0.0
    %1490 = vmatpush1.msra.mxu0 0.0
    %1491 = vmatprep.subr.mxu0 0.0
    %1492 = vmatpush1.msra.mxu0 0.0
    %1493 = vmatprep.subr.mxu0 0.0
    %1494 = vmatpush1.msra.mxu0 0.0
    %1495 = vmatprep.subr.mxu0 0.0
    %1496 = vmatpush1.msra.mxu0 0.0
    %1497 = vmatprep.subr.mxu0 0.0
    %1498 = vmatpush1.msra.mxu0 0.0
    %1499 = vmatprep.mubr.f32.mxu0 0.0
    %1500 = vmatmul.mubr.f32.gmra.mrb[0].mxu0 %v1433
    %v1501 = vpop.f32.mrb[0].mxu0
    %v1502 = vadd.f32 0.0, %v1501
    %v1503 = vpop.f32.mrb[0].mxu0
    %1504 = vdwg.mxu0
    %1505 = vst [vmem:[#allocation2] sm:$0xff] 0.0
    %1506 = vst.msk [vmem:[#allocation2] sm:$0xff] %vm572, %v485
    %1508 = vrot.lane.b32.xlu0 %v1502, 8
    %v1509 = vpop.permute.xlu0 %1508
    %vm1511 = vcmask 130112
    %1512 = vst.msk [vmem:[#allocation2] sm:$0xff] %vm1511, %v1509
    %1513 = vrot.lane.b32.xlu0 %v475, 16
    %v1514 = vpop.permute.xlu0 %1513
    %vm1516 = vcmask 195712
    %1517 = vst.msk [vmem:[#allocation2] sm:$0xff] %vm1516, %v1514
    %vm1518 = vcmask 261312
    %1519 = vst.msk [vmem:[#allocation2] sm:$0xff] %vm1518, %v1514
    %vm1520 = vcmask 269568
    %1521 = vst.msk [vmem:[#allocation2] sm:$0xff] %vm1520, %v1430
    // Predicated region
    $region90: #{tpu_custom_call.1} parent=1 // pred_check
      _
    $region91: #{tpu_custom_call.1} parent=1 // pred_check_branch
      %1523 = sbr.rel (0) target = $region93
    $region92: #{tpu_custom_call.1} parent=1 // pred_region
      %s1525 = ssub.s32 128, 128
      %1526 = vsyncadd [#allocation3], %s1525
      %s1528 = sshll.u32 [#allocation2], 4
      %s1529 = int_to_ptr.vmem [resolvable:$true] %s1528
      %1531 = dma.vmem_to_hbm [thread:$0]  %s1529, 128, %s22, [#allocation3]
    $region93: #{tpu_custom_call.1} parent=1 // pred_fallthru
      _
    // Predicated region
    $region94: #{tpu_custom_call.1} parent=1 // pred_check
      _
    $region95: #{tpu_custom_call.1} parent=1 // pred_check_branch
      %1533 = sbr.rel (0) target = $region97
    $region96: #{tpu_custom_call.1} parent=1 // pred_region
      %1534 = dma.done [#allocation3], 128
    $region97: #{tpu_custom_call.1} parent=1 // pred_fallthru
      _
    %1535 = vsyncpa [#allocation3], 1

</llo_original>
